<compile_context>
chip_gen: v5e
topology: v5e:2x2
jax: 0.10.0
libtpu: 0.0.40
codegen_flags: <defaults>
</compile_context>

<pallas_src>
import functools

import jax
import jax.numpy as jnp
from jax.experimental import pallas as pl
from jax.experimental.pallas import tpu as pltpu


# ---------------------------------------------------------------------------
# Fused kernel: num_layer LSTM layers + relu -> fc_1 -> relu -> fc head
# ---------------------------------------------------------------------------
def _make_fused_kernel(num_layer, T, B, D_in, H):
    def kernel(*args):
        # ---- unpack refs: inputs..., output, scratch... ----
        idx = 0
        x_ref = args[idx]; idx += 1                       # (T, B, D_in) time-major
        w_refs = args[idx:idx + num_layer]; idx += num_layer   # (D_l+H, 4H) stacked
        b_refs = args[idx:idx + num_layer]; idx += num_layer   # (1, 4H)
        fc1w_ref = args[idx]; idx += 1                    # (H, 128)
        fc1b_ref = args[idx]; idx += 1                    # (1, 128)
        fcw_ref = args[idx]; idx += 1                     # (128, 8)
        fcb_ref = args[idx]; idx += 1                     # (1, 8)
        out_ref = args[idx]; idx += 1                     # (num_layer*B, 8)
        hn_sc = args[idx]; idx += 1                       # (num_layer*B, H) scratch
        zx_scs = args[idx:]                               # packed [x_t | h] buffers

        # Layer-0 input: the whole x block is already VMEM-resident.
        layer_in = [x_ref[t] for t in range(T)]           # T x (B, D_in)

        for l in range(num_layer):
            d_l = D_in if l == 0 else H
            zx_sc = zx_scs[0] if l == 0 else zx_scs[1]    # (B, d_l + H)
            w = w_refs[l][...]                            # (d_l + H, 4H), hoisted load
            # Hoist the bias broadcast out of the time loop (no CSE of
            # broadcast_in_dim otherwise).
            bb = jnp.broadcast_to(b_refs[l][...], (B, 4 * H))

            h = jnp.zeros((B, H), jnp.float32)            # h_0 = 0 (matches torch.zeros)
            c = jnp.zeros((B, H), jnp.float32)            # c_0 = 0
            outs = []
            for t in range(T):                            # unrolled: T is small & static
                # Pack [x_t | h_prev] into the persistent VMEM buffer and do
                # a single MXU dot against the stacked weight.
                zx_sc[:, :d_l] = layer_in[t]
                zx_sc[:, d_l:d_l + H] = h
                gates = jnp.dot(zx_sc[...], w,
                                preferred_element_type=jnp.float32) + bb  # (B, 4H)

                # One full-vreg sigmoid + one full-vreg tanh per step.
                sig = jax.nn.sigmoid(gates)
                tg = jnp.tanh(gates)
                # PyTorch gate order: input, forget, cell, output
                i_g = sig[:, 0 * H:1 * H]
                f_g = sig[:, 1 * H:2 * H]
                g_g = tg[:, 2 * H:3 * H]
                o_g = sig[:, 3 * H:4 * H]

                c = f_g * c + i_g * g_g
                h = o_g * jnp.tanh(c)
                outs.append(h)

            layer_in = outs                               # feed next layer (VMEM-resident)
            # hn rows: layer-major then batch, matching hn.view(-1, H).
            hn_sc[l * B:(l + 1) * B, :] = h

        # ---- classification head: relu -> fc_1 -> relu -> fc ----
        hn = jnp.maximum(hn_sc[...], 0.0)
        z1 = jnp.dot(hn, fc1w_ref[...],
                     preferred_element_type=jnp.float32) + fc1b_ref[...]
        z1 = jnp.maximum(z1, 0.0)
        out_ref[...] = jnp.dot(z1, fcw_ref[...],
                               preferred_element_type=jnp.float32) + fcb_ref[...]

    return kernel


# ---------------------------------------------------------------------------
# Wrapper: prep weights (stack / transpose) and launch the single kernel
# ---------------------------------------------------------------------------
def lstm_classification_forward(params, x_btd, num_layer, hidden_size):
    """x_btd: (B, T, input_size), batch_first like PyTorch. Returns (num_layer*B, 8)."""
    B, T, D_in = x_btd.shape
    H = hidden_size
    x_tbd = jnp.transpose(x_btd, (1, 0, 2)).astype(jnp.float32)   # time-major (T, B, D)

    w_stacked, b_comb = [], []
    for l in range(num_layer):
        w_ih, w_hh, b_ih, b_hh = params["lstm"][l]
        # Stack W_ih^T and W_hh^T -> one (D_l + H, 4H) weight per layer.
        w_stacked.append(
            jnp.concatenate([w_ih.T, w_hh.T], axis=0).astype(jnp.float32))
        b_comb.append((b_ih + b_hh).reshape(1, 4 * H).astype(jnp.float32))

    fc1w = params["fc1_w"].T.astype(jnp.float32)                  # (H, 128)
    fc1b = params["fc1_b"].reshape(1, -1).astype(jnp.float32)     # (1, 128)
    fcw = params["fc_w"].T.astype(jnp.float32)                    # (128, 8)
    fcb = params["fc_b"].reshape(1, -1).astype(jnp.float32)       # (1, 8)
    F2 = fcw.shape[1]

    scratch_shapes = [
        pltpu.VMEM((num_layer * B, H), jnp.float32),              # hn buffer
        pltpu.VMEM((B, D_in + H), jnp.float32),                   # [x_t | h] for layer 0
    ]
    if num_layer > 1:
        scratch_shapes.append(pltpu.VMEM((B, 2 * H), jnp.float32))  # layers >= 1

    kernel = _make_fused_kernel(num_layer, T, B, D_in, H)

    return pl.pallas_call(
        kernel,
        out_shape=jax.ShapeDtypeStruct((num_layer * B, F2), jnp.float32),
        scratch_shapes=scratch_shapes,
    )(x_tbd, *w_stacked, *b_comb, fc1w, fc1b, fcw, fcb)


# ---------------------------------------------------------------------------
# Parameter init (deterministic, matches PyTorch layer shapes)
# ---------------------------------------------------------------------------
def init_params(key, input_size, hidden_size, num_layer):
    ks = jax.random.split(key, 4 * num_layer + 4)
    params = {"lstm": []}
    idx = 0
    for l in range(num_layer):
        d_in = input_size if l == 0 else hidden_size
        w_ih = 0.1 * jax.random.normal(ks[idx + 0], (4 * hidden_size, d_in), jnp.float32)
        w_hh = 0.1 * jax.random.normal(ks[idx + 1], (4 * hidden_size, hidden_size), jnp.float32)
        b_ih = 0.1 * jax.random.normal(ks[idx + 2], (4 * hidden_size,), jnp.float32)
        b_hh = 0.1 * jax.random.normal(ks[idx + 3], (4 * hidden_size,), jnp.float32)
        params["lstm"].append((w_ih, w_hh, b_ih, b_hh))
        idx += 4
    params["fc1_w"] = 0.1 * jax.random.normal(ks[idx + 0], (128, hidden_size), jnp.float32)
    params["fc1_b"] = 0.1 * jax.random.normal(ks[idx + 1], (128,), jnp.float32)
    params["fc_w"] = 0.1 * jax.random.normal(ks[idx + 2], (8, 128), jnp.float32)
    params["fc_b"] = 0.1 * jax.random.normal(ks[idx + 3], (8,), jnp.float32)
    return params


if __name__ == "__main__":
    # Small shapes consistent with the module's forward.
    batch = 4
    seq_len = 8
    input_size = 16
    hidden_size = 32
    num_layer = 2

    key = jax.random.PRNGKey(0)
    k_param, k_x = jax.random.split(key)
    params = init_params(k_param, input_size, hidden_size, num_layer)
    x = jax.random.normal(k_x, (batch, seq_len, input_size), jnp.float32)

    fwd = jax.jit(functools.partial(
        lstm_classification_forward,
        num_layer=num_layer, hidden_size=hidden_size))
    out = fwd(params, x)
    out = jax.block_until_ready(out)

    assert out.shape == (num_layer * batch, 8), out.shape
    assert bool(jnp.all(jnp.isfinite(out)))
    print("KERNEL_OK")
</pallas_src>

<mosaic_0001>
module attributes {stable_mosaic.version = 11 : i64} {
  func.func @kernel(%arg0: memref<8x4x16xf32, #tpu.memory_space<vmem>>, %arg1: memref<48x128xf32, #tpu.memory_space<vmem>>, %arg2: memref<64x128xf32, #tpu.memory_space<vmem>>, %arg3: memref<1x128xf32, #tpu.memory_space<vmem>>, %arg4: memref<1x128xf32, #tpu.memory_space<vmem>>, %arg5: memref<32x128xf32, #tpu.memory_space<vmem>>, %arg6: memref<1x128xf32, #tpu.memory_space<vmem>>, %arg7: memref<128x8xf32, #tpu.memory_space<vmem>>, %arg8: memref<1x8xf32, #tpu.memory_space<vmem>>, %arg9: memref<8x8xf32, #tpu.memory_space<vmem>>, %arg10: memref<8x32xf32, #tpu.memory_space<vmem>>, %arg11: memref<4x48xf32, #tpu.memory_space<vmem>>, %arg12: memref<4x64xf32, #tpu.memory_space<vmem>>) attributes {dimension_semantics = [], scalar_prefetch = 0 : i64, scratch_operands = 3 : i64, tpu.core_type = #tpu.core_type<tc>} {
    %c0 = arith.constant 0 : index
    %c0_0 = arith.constant 0 : index
    %c0_1 = arith.constant 0 : index
    %0 = vector.load %arg0[%c0, %c0_0, %c0_1] : memref<8x4x16xf32, #tpu.memory_space<vmem>>, vector<1x4x16xf32>
    %1 = vector.shape_cast %0 : vector<1x4x16xf32> to vector<4x16xf32>
    %c1 = arith.constant 1 : index
    %c0_2 = arith.constant 0 : index
    %c0_3 = arith.constant 0 : index
    %2 = vector.load %arg0[%c1, %c0_2, %c0_3] : memref<8x4x16xf32, #tpu.memory_space<vmem>>, vector<1x4x16xf32>
    %3 = vector.shape_cast %2 : vector<1x4x16xf32> to vector<4x16xf32>
    %c2 = arith.constant 2 : index
    %c0_4 = arith.constant 0 : index
    %c0_5 = arith.constant 0 : index
    %4 = vector.load %arg0[%c2, %c0_4, %c0_5] : memref<8x4x16xf32, #tpu.memory_space<vmem>>, vector<1x4x16xf32>
    %5 = vector.shape_cast %4 : vector<1x4x16xf32> to vector<4x16xf32>
    %c3 = arith.constant 3 : index
    %c0_6 = arith.constant 0 : index
    %c0_7 = arith.constant 0 : index
    %6 = vector.load %arg0[%c3, %c0_6, %c0_7] : memref<8x4x16xf32, #tpu.memory_space<vmem>>, vector<1x4x16xf32>
    %7 = vector.shape_cast %6 : vector<1x4x16xf32> to vector<4x16xf32>
    %c4 = arith.constant 4 : index
    %c0_8 = arith.constant 0 : index
    %c0_9 = arith.constant 0 : index
    %8 = vector.load %arg0[%c4, %c0_8, %c0_9] : memref<8x4x16xf32, #tpu.memory_space<vmem>>, vector<1x4x16xf32>
    %9 = vector.shape_cast %8 : vector<1x4x16xf32> to vector<4x16xf32>
    %c5 = arith.constant 5 : index
    %c0_10 = arith.constant 0 : index
    %c0_11 = arith.constant 0 : index
    %10 = vector.load %arg0[%c5, %c0_10, %c0_11] : memref<8x4x16xf32, #tpu.memory_space<vmem>>, vector<1x4x16xf32>
    %11 = vector.shape_cast %10 : vector<1x4x16xf32> to vector<4x16xf32>
    %c6 = arith.constant 6 : index
    %c0_12 = arith.constant 0 : index
    %c0_13 = arith.constant 0 : index
    %12 = vector.load %arg0[%c6, %c0_12, %c0_13] : memref<8x4x16xf32, #tpu.memory_space<vmem>>, vector<1x4x16xf32>
    %13 = vector.shape_cast %12 : vector<1x4x16xf32> to vector<4x16xf32>
    %c7 = arith.constant 7 : index
    %c0_14 = arith.constant 0 : index
    %c0_15 = arith.constant 0 : index
    %14 = vector.load %arg0[%c7, %c0_14, %c0_15] : memref<8x4x16xf32, #tpu.memory_space<vmem>>, vector<1x4x16xf32>
    %15 = vector.shape_cast %14 : vector<1x4x16xf32> to vector<4x16xf32>
    %c0_16 = arith.constant 0 : index
    %c0_17 = arith.constant 0 : index
    %16 = vector.load %arg1[%c0_16, %c0_17] : memref<48x128xf32, #tpu.memory_space<vmem>>, vector<48x128xf32>
    %c0_18 = arith.constant 0 : index
    %c0_19 = arith.constant 0 : index
    %17 = vector.load %arg3[%c0_18, %c0_19] : memref<1x128xf32, #tpu.memory_space<vmem>>, vector<1x128xf32>
    %18 = vector.shape_cast %17 : vector<1x128xf32> to vector<1x128xf32>
    %19 = vector.broadcast %18 : vector<1x128xf32> to vector<4x128xf32>
    %cst = arith.constant 0.000000e+00 : f32
    %20 = vector.broadcast %cst : f32 to vector<4x32xf32>
    %cst_20 = arith.constant 0.000000e+00 : f32
    %21 = vector.broadcast %cst_20 : f32 to vector<4x32xf32>
    %c0_21 = arith.constant 0 : index
    %c0_22 = arith.constant 0 : index
    %22 = vector.load %arg11[%c0_21, %c0_22] : memref<4x48xf32, #tpu.memory_space<vmem>>, vector<4x16xf32>
    tpu.vector_store %arg11[%c0_21, %c0_22], %1 {strides = array<i32>} : memref<4x48xf32, #tpu.memory_space<vmem>>, vector<4x16xf32>,
    %c0_23 = arith.constant 0 : index
    %c16 = arith.constant 16 : index
    %23 = vector.load %arg11[%c0_23, %c16] : memref<4x48xf32, #tpu.memory_space<vmem>>, vector<4x32xf32>
    tpu.vector_store %arg11[%c0_23, %c16], %20 {strides = array<i32>} : memref<4x48xf32, #tpu.memory_space<vmem>>, vector<4x32xf32>,
    %c0_24 = arith.constant 0 : index
    %c0_25 = arith.constant 0 : index
    %24 = vector.load %arg11[%c0_24, %c0_25] : memref<4x48xf32, #tpu.memory_space<vmem>>, vector<4x48xf32>
    %cst_26 = arith.constant dense<0.000000e+00> : vector<4x128xf32>
    %25 = tpu.matmul %24, %16, %cst_26 {dimension_numbers = #tpu.dot_dimension_numbers<[1], [0], [0], [1], [0, 0, 1, 1], [], []>} : vector<4x48xf32>, vector<48x128xf32>, vector<4x128xf32> -> vector<4x128xf32>
    %26 = arith.addf %25, %19 : vector<4x128xf32>
    %27 = arith.negf %26 : vector<4x128xf32>
    %28 = math.exp %27 : vector<4x128xf32>
    %cst_27 = arith.constant 1.000000e+00 : f32
    %29 = vector.broadcast %cst_27 : f32 to vector<4x128xf32>
    %30 = arith.addf %29, %28 : vector<4x128xf32>
    %31 = arith.divf %29, %30 : vector<4x128xf32>
    %32 = math.tanh %26 : vector<4x128xf32>
    %33 = vector.extract_strided_slice %31 {offsets = [0, 0], sizes = [4, 32], strides = [1, 1]} : vector<4x128xf32> to vector<4x32xf32>
    %34 = vector.extract_strided_slice %31 {offsets = [0, 32], sizes = [4, 32], strides = [1, 1]} : vector<4x128xf32> to vector<4x32xf32>
    %35 = vector.extract_strided_slice %32 {offsets = [0, 64], sizes = [4, 32], strides = [1, 1]} : vector<4x128xf32> to vector<4x32xf32>
    %36 = vector.extract_strided_slice %31 {offsets = [0, 96], sizes = [4, 32], strides = [1, 1]} : vector<4x128xf32> to vector<4x32xf32>
    %37 = arith.mulf %34, %21 : vector<4x32xf32>
    %38 = arith.mulf %33, %35 : vector<4x32xf32>
    %39 = arith.addf %37, %38 : vector<4x32xf32>
    %40 = math.tanh %39 : vector<4x32xf32>
    %41 = arith.mulf %36, %40 : vector<4x32xf32>
    %c0_28 = arith.constant 0 : index
    %c0_29 = arith.constant 0 : index
    %42 = vector.load %arg11[%c0_28, %c0_29] : memref<4x48xf32, #tpu.memory_space<vmem>>, vector<4x16xf32>
    tpu.vector_store %arg11[%c0_28, %c0_29], %3 {strides = array<i32>} : memref<4x48xf32, #tpu.memory_space<vmem>>, vector<4x16xf32>,
    %c0_30 = arith.constant 0 : index
    %c16_31 = arith.constant 16 : index
    %43 = vector.load %arg11[%c0_30, %c16_31] : memref<4x48xf32, #tpu.memory_space<vmem>>, vector<4x32xf32>
    tpu.vector_store %arg11[%c0_30, %c16_31], %41 {strides = array<i32>} : memref<4x48xf32, #tpu.memory_space<vmem>>, vector<4x32xf32>,
    %c0_32 = arith.constant 0 : index
    %c0_33 = arith.constant 0 : index
    %44 = vector.load %arg11[%c0_32, %c0_33] : memref<4x48xf32, #tpu.memory_space<vmem>>, vector<4x48xf32>
    %cst_34 = arith.constant dense<0.000000e+00> : vector<4x128xf32>
    %45 = tpu.matmul %44, %16, %cst_34 {dimension_numbers = #tpu.dot_dimension_numbers<[1], [0], [0], [1], [0, 0, 1, 1], [], []>} : vector<4x48xf32>, vector<48x128xf32>, vector<4x128xf32> -> vector<4x128xf32>
    %46 = arith.addf %45, %19 : vector<4x128xf32>
    %47 = arith.negf %46 : vector<4x128xf32>
    %48 = math.exp %47 : vector<4x128xf32>
    %cst_35 = arith.constant 1.000000e+00 : f32
    %49 = vector.broadcast %cst_35 : f32 to vector<4x128xf32>
    %50 = arith.addf %49, %48 : vector<4x128xf32>
    %51 = arith.divf %49, %50 : vector<4x128xf32>
    %52 = math.tanh %46 : vector<4x128xf32>
    %53 = vector.extract_strided_slice %51 {offsets = [0, 0], sizes = [4, 32], strides = [1, 1]} : vector<4x128xf32> to vector<4x32xf32>
    %54 = vector.extract_strided_slice %51 {offsets = [0, 32], sizes = [4, 32], strides = [1, 1]} : vector<4x128xf32> to vector<4x32xf32>
    %55 = vector.extract_strided_slice %52 {offsets = [0, 64], sizes = [4, 32], strides = [1, 1]} : vector<4x128xf32> to vector<4x32xf32>
    %56 = vector.extract_strided_slice %51 {offsets = [0, 96], sizes = [4, 32], strides = [1, 1]} : vector<4x128xf32> to vector<4x32xf32>
    %57 = arith.mulf %54, %39 : vector<4x32xf32>
    %58 = arith.mulf %53, %55 : vector<4x32xf32>
    %59 = arith.addf %57, %58 : vector<4x32xf32>
    %60 = math.tanh %59 : vector<4x32xf32>
    %61 = arith.mulf %56, %60 : vector<4x32xf32>
    %c0_36 = arith.constant 0 : index
    %c0_37 = arith.constant 0 : index
    %62 = vector.load %arg11[%c0_36, %c0_37] : memref<4x48xf32, #tpu.memory_space<vmem>>, vector<4x16xf32>
    tpu.vector_store %arg11[%c0_36, %c0_37], %5 {strides = array<i32>} : memref<4x48xf32, #tpu.memory_space<vmem>>, vector<4x16xf32>,
    %c0_38 = arith.constant 0 : index
    %c16_39 = arith.constant 16 : index
    %63 = vector.load %arg11[%c0_38, %c16_39] : memref<4x48xf32, #tpu.memory_space<vmem>>, vector<4x32xf32>
    tpu.vector_store %arg11[%c0_38, %c16_39], %61 {strides = array<i32>} : memref<4x48xf32, #tpu.memory_space<vmem>>, vector<4x32xf32>,
    %c0_40 = arith.constant 0 : index
    %c0_41 = arith.constant 0 : index
    %64 = vector.load %arg11[%c0_40, %c0_41] : memref<4x48xf32, #tpu.memory_space<vmem>>, vector<4x48xf32>
    %cst_42 = arith.constant dense<0.000000e+00> : vector<4x128xf32>
    %65 = tpu.matmul %64, %16, %cst_42 {dimension_numbers = #tpu.dot_dimension_numbers<[1], [0], [0], [1], [0, 0, 1, 1], [], []>} : vector<4x48xf32>, vector<48x128xf32>, vector<4x128xf32> -> vector<4x128xf32>
    %66 = arith.addf %65, %19 : vector<4x128xf32>
    %67 = arith.negf %66 : vector<4x128xf32>
    %68 = math.exp %67 : vector<4x128xf32>
    %cst_43 = arith.constant 1.000000e+00 : f32
    %69 = vector.broadcast %cst_43 : f32 to vector<4x128xf32>
    %70 = arith.addf %69, %68 : vector<4x128xf32>
    %71 = arith.divf %69, %70 : vector<4x128xf32>
    %72 = math.tanh %66 : vector<4x128xf32>
    %73 = vector.extract_strided_slice %71 {offsets = [0, 0], sizes = [4, 32], strides = [1, 1]} : vector<4x128xf32> to vector<4x32xf32>
    %74 = vector.extract_strided_slice %71 {offsets = [0, 32], sizes = [4, 32], strides = [1, 1]} : vector<4x128xf32> to vector<4x32xf32>
    %75 = vector.extract_strided_slice %72 {offsets = [0, 64], sizes = [4, 32], strides = [1, 1]} : vector<4x128xf32> to vector<4x32xf32>
    %76 = vector.extract_strided_slice %71 {offsets = [0, 96], sizes = [4, 32], strides = [1, 1]} : vector<4x128xf32> to vector<4x32xf32>
    %77 = arith.mulf %74, %59 : vector<4x32xf32>
    %78 = arith.mulf %73, %75 : vector<4x32xf32>
    %79 = arith.addf %77, %78 : vector<4x32xf32>
    %80 = math.tanh %79 : vector<4x32xf32>
    %81 = arith.mulf %76, %80 : vector<4x32xf32>
    %c0_44 = arith.constant 0 : index
    %c0_45 = arith.constant 0 : index
    %82 = vector.load %arg11[%c0_44, %c0_45] : memref<4x48xf32, #tpu.memory_space<vmem>>, vector<4x16xf32>
    tpu.vector_store %arg11[%c0_44, %c0_45], %7 {strides = array<i32>} : memref<4x48xf32, #tpu.memory_space<vmem>>, vector<4x16xf32>,
    %c0_46 = arith.constant 0 : index
    %c16_47 = arith.constant 16 : index
    %83 = vector.load %arg11[%c0_46, %c16_47] : memref<4x48xf32, #tpu.memory_space<vmem>>, vector<4x32xf32>
    tpu.vector_store %arg11[%c0_46, %c16_47], %81 {strides = array<i32>} : memref<4x48xf32, #tpu.memory_space<vmem>>, vector<4x32xf32>,
    %c0_48 = arith.constant 0 : index
    %c0_49 = arith.constant 0 : index
    %84 = vector.load %arg11[%c0_48, %c0_49] : memref<4x48xf32, #tpu.memory_space<vmem>>, vector<4x48xf32>
    %cst_50 = arith.constant dense<0.000000e+00> : vector<4x128xf32>
    %85 = tpu.matmul %84, %16, %cst_50 {dimension_numbers = #tpu.dot_dimension_numbers<[1], [0], [0], [1], [0, 0, 1, 1], [], []>} : vector<4x48xf32>, vector<48x128xf32>, vector<4x128xf32> -> vector<4x128xf32>
    %86 = arith.addf %85, %19 : vector<4x128xf32>
    %87 = arith.negf %86 : vector<4x128xf32>
    %88 = math.exp %87 : vector<4x128xf32>
    %cst_51 = arith.constant 1.000000e+00 : f32
    %89 = vector.broadcast %cst_51 : f32 to vector<4x128xf32>
    %90 = arith.addf %89, %88 : vector<4x128xf32>
    %91 = arith.divf %89, %90 : vector<4x128xf32>
    %92 = math.tanh %86 : vector<4x128xf32>
    %93 = vector.extract_strided_slice %91 {offsets = [0, 0], sizes = [4, 32], strides = [1, 1]} : vector<4x128xf32> to vector<4x32xf32>
    %94 = vector.extract_strided_slice %91 {offsets = [0, 32], sizes = [4, 32], strides = [1, 1]} : vector<4x128xf32> to vector<4x32xf32>
    %95 = vector.extract_strided_slice %92 {offsets = [0, 64], sizes = [4, 32], strides = [1, 1]} : vector<4x128xf32> to vector<4x32xf32>
    %96 = vector.extract_strided_slice %91 {offsets = [0, 96], sizes = [4, 32], strides = [1, 1]} : vector<4x128xf32> to vector<4x32xf32>
    %97 = arith.mulf %94, %79 : vector<4x32xf32>
    %98 = arith.mulf %93, %95 : vector<4x32xf32>
    %99 = arith.addf %97, %98 : vector<4x32xf32>
    %100 = math.tanh %99 : vector<4x32xf32>
    %101 = arith.mulf %96, %100 : vector<4x32xf32>
    %c0_52 = arith.constant 0 : index
    %c0_53 = arith.constant 0 : index
    %102 = vector.load %arg11[%c0_52, %c0_53] : memref<4x48xf32, #tpu.memory_space<vmem>>, vector<4x16xf32>
    tpu.vector_store %arg11[%c0_52, %c0_53], %9 {strides = array<i32>} : memref<4x48xf32, #tpu.memory_space<vmem>>, vector<4x16xf32>,
    %c0_54 = arith.constant 0 : index
    %c16_55 = arith.constant 16 : index
    %103 = vector.load %arg11[%c0_54, %c16_55] : memref<4x48xf32, #tpu.memory_space<vmem>>, vector<4x32xf32>
    tpu.vector_store %arg11[%c0_54, %c16_55], %101 {strides = array<i32>} : memref<4x48xf32, #tpu.memory_space<vmem>>, vector<4x32xf32>,
    %c0_56 = arith.constant 0 : index
    %c0_57 = arith.constant 0 : index
    %104 = vector.load %arg11[%c0_56, %c0_57] : memref<4x48xf32, #tpu.memory_space<vmem>>, vector<4x48xf32>
    %cst_58 = arith.constant dense<0.000000e+00> : vector<4x128xf32>
    %105 = tpu.matmul %104, %16, %cst_58 {dimension_numbers = #tpu.dot_dimension_numbers<[1], [0], [0], [1], [0, 0, 1, 1], [], []>} : vector<4x48xf32>, vector<48x128xf32>, vector<4x128xf32> -> vector<4x128xf32>
    %106 = arith.addf %105, %19 : vector<4x128xf32>
    %107 = arith.negf %106 : vector<4x128xf32>
    %108 = math.exp %107 : vector<4x128xf32>
    %cst_59 = arith.constant 1.000000e+00 : f32
    %109 = vector.broadcast %cst_59 : f32 to vector<4x128xf32>
    %110 = arith.addf %109, %108 : vector<4x128xf32>
    %111 = arith.divf %109, %110 : vector<4x128xf32>
    %112 = math.tanh %106 : vector<4x128xf32>
    %113 = vector.extract_strided_slice %111 {offsets = [0, 0], sizes = [4, 32], strides = [1, 1]} : vector<4x128xf32> to vector<4x32xf32>
    %114 = vector.extract_strided_slice %111 {offsets = [0, 32], sizes = [4, 32], strides = [1, 1]} : vector<4x128xf32> to vector<4x32xf32>
    %115 = vector.extract_strided_slice %112 {offsets = [0, 64], sizes = [4, 32], strides = [1, 1]} : vector<4x128xf32> to vector<4x32xf32>
    %116 = vector.extract_strided_slice %111 {offsets = [0, 96], sizes = [4, 32], strides = [1, 1]} : vector<4x128xf32> to vector<4x32xf32>
    %117 = arith.mulf %114, %99 : vector<4x32xf32>
    %118 = arith.mulf %113, %115 : vector<4x32xf32>
    %119 = arith.addf %117, %118 : vector<4x32xf32>
    %120 = math.tanh %119 : vector<4x32xf32>
    %121 = arith.mulf %116, %120 : vector<4x32xf32>
    %c0_60 = arith.constant 0 : index
    %c0_61 = arith.constant 0 : index
    %122 = vector.load %arg11[%c0_60, %c0_61] : memref<4x48xf32, #tpu.memory_space<vmem>>, vector<4x16xf32>
    tpu.vector_store %arg11[%c0_60, %c0_61], %11 {strides = array<i32>} : memref<4x48xf32, #tpu.memory_space<vmem>>, vector<4x16xf32>,
    %c0_62 = arith.constant 0 : index
    %c16_63 = arith.constant 16 : index
    %123 = vector.load %arg11[%c0_62, %c16_63] : memref<4x48xf32, #tpu.memory_space<vmem>>, vector<4x32xf32>
    tpu.vector_store %arg11[%c0_62, %c16_63], %121 {strides = array<i32>} : memref<4x48xf32, #tpu.memory_space<vmem>>, vector<4x32xf32>,
    %c0_64 = arith.constant 0 : index
    %c0_65 = arith.constant 0 : index
    %124 = vector.load %arg11[%c0_64, %c0_65] : memref<4x48xf32, #tpu.memory_space<vmem>>, vector<4x48xf32>
    %cst_66 = arith.constant dense<0.000000e+00> : vector<4x128xf32>
    %125 = tpu.matmul %124, %16, %cst_66 {dimension_numbers = #tpu.dot_dimension_numbers<[1], [0], [0], [1], [0, 0, 1, 1], [], []>} : vector<4x48xf32>, vector<48x128xf32>, vector<4x128xf32> -> vector<4x128xf32>
    %126 = arith.addf %125, %19 : vector<4x128xf32>
    %127 = arith.negf %126 : vector<4x128xf32>
    %128 = math.exp %127 : vector<4x128xf32>
    %cst_67 = arith.constant 1.000000e+00 : f32
    %129 = vector.broadcast %cst_67 : f32 to vector<4x128xf32>
    %130 = arith.addf %129, %128 : vector<4x128xf32>
    %131 = arith.divf %129, %130 : vector<4x128xf32>
    %132 = math.tanh %126 : vector<4x128xf32>
    %133 = vector.extract_strided_slice %131 {offsets = [0, 0], sizes = [4, 32], strides = [1, 1]} : vector<4x128xf32> to vector<4x32xf32>
    %134 = vector.extract_strided_slice %131 {offsets = [0, 32], sizes = [4, 32], strides = [1, 1]} : vector<4x128xf32> to vector<4x32xf32>
    %135 = vector.extract_strided_slice %132 {offsets = [0, 64], sizes = [4, 32], strides = [1, 1]} : vector<4x128xf32> to vector<4x32xf32>
    %136 = vector.extract_strided_slice %131 {offsets = [0, 96], sizes = [4, 32], strides = [1, 1]} : vector<4x128xf32> to vector<4x32xf32>
    %137 = arith.mulf %134, %119 : vector<4x32xf32>
    %138 = arith.mulf %133, %135 : vector<4x32xf32>
    %139 = arith.addf %137, %138 : vector<4x32xf32>
    %140 = math.tanh %139 : vector<4x32xf32>
    %141 = arith.mulf %136, %140 : vector<4x32xf32>
    %c0_68 = arith.constant 0 : index
    %c0_69 = arith.constant 0 : index
    %142 = vector.load %arg11[%c0_68, %c0_69] : memref<4x48xf32, #tpu.memory_space<vmem>>, vector<4x16xf32>
    tpu.vector_store %arg11[%c0_68, %c0_69], %13 {strides = array<i32>} : memref<4x48xf32, #tpu.memory_space<vmem>>, vector<4x16xf32>,
    %c0_70 = arith.constant 0 : index
    %c16_71 = arith.constant 16 : index
    %143 = vector.load %arg11[%c0_70, %c16_71] : memref<4x48xf32, #tpu.memory_space<vmem>>, vector<4x32xf32>
    tpu.vector_store %arg11[%c0_70, %c16_71], %141 {strides = array<i32>} : memref<4x48xf32, #tpu.memory_space<vmem>>, vector<4x32xf32>,
    %c0_72 = arith.constant 0 : index
    %c0_73 = arith.constant 0 : index
    %144 = vector.load %arg11[%c0_72, %c0_73] : memref<4x48xf32, #tpu.memory_space<vmem>>, vector<4x48xf32>
    %cst_74 = arith.constant dense<0.000000e+00> : vector<4x128xf32>
    %145 = tpu.matmul %144, %16, %cst_74 {dimension_numbers = #tpu.dot_dimension_numbers<[1], [0], [0], [1], [0, 0, 1, 1], [], []>} : vector<4x48xf32>, vector<48x128xf32>, vector<4x128xf32> -> vector<4x128xf32>
    %146 = arith.addf %145, %19 : vector<4x128xf32>
    %147 = arith.negf %146 : vector<4x128xf32>
    %148 = math.exp %147 : vector<4x128xf32>
    %cst_75 = arith.constant 1.000000e+00 : f32
    %149 = vector.broadcast %cst_75 : f32 to vector<4x128xf32>
    %150 = arith.addf %149, %148 : vector<4x128xf32>
    %151 = arith.divf %149, %150 : vector<4x128xf32>
    %152 = math.tanh %146 : vector<4x128xf32>
    %153 = vector.extract_strided_slice %151 {offsets = [0, 0], sizes = [4, 32], strides = [1, 1]} : vector<4x128xf32> to vector<4x32xf32>
    %154 = vector.extract_strided_slice %151 {offsets = [0, 32], sizes = [4, 32], strides = [1, 1]} : vector<4x128xf32> to vector<4x32xf32>
    %155 = vector.extract_strided_slice %152 {offsets = [0, 64], sizes = [4, 32], strides = [1, 1]} : vector<4x128xf32> to vector<4x32xf32>
    %156 = vector.extract_strided_slice %151 {offsets = [0, 96], sizes = [4, 32], strides = [1, 1]} : vector<4x128xf32> to vector<4x32xf32>
    %157 = arith.mulf %154, %139 : vector<4x32xf32>
    %158 = arith.mulf %153, %155 : vector<4x32xf32>
    %159 = arith.addf %157, %158 : vector<4x32xf32>
    %160 = math.tanh %159 : vector<4x32xf32>
    %161 = arith.mulf %156, %160 : vector<4x32xf32>
    %c0_76 = arith.constant 0 : index
    %c0_77 = arith.constant 0 : index
    %162 = vector.load %arg11[%c0_76, %c0_77] : memref<4x48xf32, #tpu.memory_space<vmem>>, vector<4x16xf32>
    tpu.vector_store %arg11[%c0_76, %c0_77], %15 {strides = array<i32>} : memref<4x48xf32, #tpu.memory_space<vmem>>, vector<4x16xf32>,
    %c0_78 = arith.constant 0 : index
    %c16_79 = arith.constant 16 : index
    %163 = vector.load %arg11[%c0_78, %c16_79] : memref<4x48xf32, #tpu.memory_space<vmem>>, vector<4x32xf32>
    tpu.vector_store %arg11[%c0_78, %c16_79], %161 {strides = array<i32>} : memref<4x48xf32, #tpu.memory_space<vmem>>, vector<4x32xf32>,
    %c0_80 = arith.constant 0 : index
    %c0_81 = arith.constant 0 : index
    %164 = vector.load %arg11[%c0_80, %c0_81] : memref<4x48xf32, #tpu.memory_space<vmem>>, vector<4x48xf32>
    %cst_82 = arith.constant dense<0.000000e+00> : vector<4x128xf32>
    %165 = tpu.matmul %164, %16, %cst_82 {dimension_numbers = #tpu.dot_dimension_numbers<[1], [0], [0], [1], [0, 0, 1, 1], [], []>} : vector<4x48xf32>, vector<48x128xf32>, vector<4x128xf32> -> vector<4x128xf32>
    %166 = arith.addf %165, %19 : vector<4x128xf32>
    %167 = arith.negf %166 : vector<4x128xf32>
    %168 = math.exp %167 : vector<4x128xf32>
    %cst_83 = arith.constant 1.000000e+00 : f32
    %169 = vector.broadcast %cst_83 : f32 to vector<4x128xf32>
    %170 = arith.addf %169, %168 : vector<4x128xf32>
    %171 = arith.divf %169, %170 : vector<4x128xf32>
    %172 = math.tanh %166 : vector<4x128xf32>
    %173 = vector.extract_strided_slice %171 {offsets = [0, 0], sizes = [4, 32], strides = [1, 1]} : vector<4x128xf32> to vector<4x32xf32>
    %174 = vector.extract_strided_slice %171 {offsets = [0, 32], sizes = [4, 32], strides = [1, 1]} : vector<4x128xf32> to vector<4x32xf32>
    %175 = vector.extract_strided_slice %172 {offsets = [0, 64], sizes = [4, 32], strides = [1, 1]} : vector<4x128xf32> to vector<4x32xf32>
    %176 = vector.extract_strided_slice %171 {offsets = [0, 96], sizes = [4, 32], strides = [1, 1]} : vector<4x128xf32> to vector<4x32xf32>
    %177 = arith.mulf %174, %159 : vector<4x32xf32>
    %178 = arith.mulf %173, %175 : vector<4x32xf32>
    %179 = arith.addf %177, %178 : vector<4x32xf32>
    %180 = math.tanh %179 : vector<4x32xf32>
    %181 = arith.mulf %176, %180 : vector<4x32xf32>
    %c0_84 = arith.constant 0 : index
    %c0_85 = arith.constant 0 : index
    %182 = vector.load %arg10[%c0_84, %c0_85] : memref<8x32xf32, #tpu.memory_space<vmem>>, vector<4x32xf32>
    tpu.vector_store %arg10[%c0_84, %c0_85], %181 {strides = array<i32>} : memref<8x32xf32, #tpu.memory_space<vmem>>, vector<4x32xf32>,
    %c0_86 = arith.constant 0 : index
    %c0_87 = arith.constant 0 : index
    %183 = vector.load %arg2[%c0_86, %c0_87] : memref<64x128xf32, #tpu.memory_space<vmem>>, vector<64x128xf32>
    %c0_88 = arith.constant 0 : index
    %c0_89 = arith.constant 0 : index
    %184 = vector.load %arg4[%c0_88, %c0_89] : memref<1x128xf32, #tpu.memory_space<vmem>>, vector<1x128xf32>
    %185 = vector.shape_cast %184 : vector<1x128xf32> to vector<1x128xf32>
    %186 = vector.broadcast %185 : vector<1x128xf32> to vector<4x128xf32>
    %cst_90 = arith.constant 0.000000e+00 : f32
    %187 = vector.broadcast %cst_90 : f32 to vector<4x32xf32>
    %cst_91 = arith.constant 0.000000e+00 : f32
    %188 = vector.broadcast %cst_91 : f32 to vector<4x32xf32>
    %c0_92 = arith.constant 0 : index
    %c0_93 = arith.constant 0 : index
    %189 = vector.load %arg12[%c0_92, %c0_93] : memref<4x64xf32, #tpu.memory_space<vmem>>, vector<4x32xf32>
    tpu.vector_store %arg12[%c0_92, %c0_93], %41 {strides = array<i32>} : memref<4x64xf32, #tpu.memory_space<vmem>>, vector<4x32xf32>,
    %c0_94 = arith.constant 0 : index
    %c32 = arith.constant 32 : index
    %190 = vector.load %arg12[%c0_94, %c32] : memref<4x64xf32, #tpu.memory_space<vmem>>, vector<4x32xf32>
    tpu.vector_store %arg12[%c0_94, %c32], %187 {strides = array<i32>} : memref<4x64xf32, #tpu.memory_space<vmem>>, vector<4x32xf32>,
    %c0_95 = arith.constant 0 : index
    %c0_96 = arith.constant 0 : index
    %191 = vector.load %arg12[%c0_95, %c0_96] : memref<4x64xf32, #tpu.memory_space<vmem>>, vector<4x64xf32>
    %cst_97 = arith.constant dense<0.000000e+00> : vector<4x128xf32>
    %192 = tpu.matmul %191, %183, %cst_97 {dimension_numbers = #tpu.dot_dimension_numbers<[1], [0], [0], [1], [0, 0, 1, 1], [], []>} : vector<4x64xf32>, vector<64x128xf32>, vector<4x128xf32> -> vector<4x128xf32>
    %193 = arith.addf %192, %186 : vector<4x128xf32>
    %194 = arith.negf %193 : vector<4x128xf32>
    %195 = math.exp %194 : vector<4x128xf32>
    %cst_98 = arith.constant 1.000000e+00 : f32
    %196 = vector.broadcast %cst_98 : f32 to vector<4x128xf32>
    %197 = arith.addf %196, %195 : vector<4x128xf32>
    %198 = arith.divf %196, %197 : vector<4x128xf32>
    %199 = math.tanh %193 : vector<4x128xf32>
    %200 = vector.extract_strided_slice %198 {offsets = [0, 0], sizes = [4, 32], strides = [1, 1]} : vector<4x128xf32> to vector<4x32xf32>
    %201 = vector.extract_strided_slice %198 {offsets = [0, 32], sizes = [4, 32], strides = [1, 1]} : vector<4x128xf32> to vector<4x32xf32>
    %202 = vector.extract_strided_slice %199 {offsets = [0, 64], sizes = [4, 32], strides = [1, 1]} : vector<4x128xf32> to vector<4x32xf32>
    %203 = vector.extract_strided_slice %198 {offsets = [0, 96], sizes = [4, 32], strides = [1, 1]} : vector<4x128xf32> to vector<4x32xf32>
    %204 = arith.mulf %201, %188 : vector<4x32xf32>
    %205 = arith.mulf %200, %202 : vector<4x32xf32>
    %206 = arith.addf %204, %205 : vector<4x32xf32>
    %207 = math.tanh %206 : vector<4x32xf32>
    %208 = arith.mulf %203, %207 : vector<4x32xf32>
    %c0_99 = arith.constant 0 : index
    %c0_100 = arith.constant 0 : index
    %209 = vector.load %arg12[%c0_99, %c0_100] : memref<4x64xf32, #tpu.memory_space<vmem>>, vector<4x32xf32>
    tpu.vector_store %arg12[%c0_99, %c0_100], %61 {strides = array<i32>} : memref<4x64xf32, #tpu.memory_space<vmem>>, vector<4x32xf32>,
    %c0_101 = arith.constant 0 : index
    %c32_102 = arith.constant 32 : index
    %210 = vector.load %arg12[%c0_101, %c32_102] : memref<4x64xf32, #tpu.memory_space<vmem>>, vector<4x32xf32>
    tpu.vector_store %arg12[%c0_101, %c32_102], %208 {strides = array<i32>} : memref<4x64xf32, #tpu.memory_space<vmem>>, vector<4x32xf32>,
    %c0_103 = arith.constant 0 : index
    %c0_104 = arith.constant 0 : index
    %211 = vector.load %arg12[%c0_103, %c0_104] : memref<4x64xf32, #tpu.memory_space<vmem>>, vector<4x64xf32>
    %cst_105 = arith.constant dense<0.000000e+00> : vector<4x128xf32>
    %212 = tpu.matmul %211, %183, %cst_105 {dimension_numbers = #tpu.dot_dimension_numbers<[1], [0], [0], [1], [0, 0, 1, 1], [], []>} : vector<4x64xf32>, vector<64x128xf32>, vector<4x128xf32> -> vector<4x128xf32>
    %213 = arith.addf %212, %186 : vector<4x128xf32>
    %214 = arith.negf %213 : vector<4x128xf32>
    %215 = math.exp %214 : vector<4x128xf32>
    %cst_106 = arith.constant 1.000000e+00 : f32
    %216 = vector.broadcast %cst_106 : f32 to vector<4x128xf32>
    %217 = arith.addf %216, %215 : vector<4x128xf32>
    %218 = arith.divf %216, %217 : vector<4x128xf32>
    %219 = math.tanh %213 : vector<4x128xf32>
    %220 = vector.extract_strided_slice %218 {offsets = [0, 0], sizes = [4, 32], strides = [1, 1]} : vector<4x128xf32> to vector<4x32xf32>
    %221 = vector.extract_strided_slice %218 {offsets = [0, 32], sizes = [4, 32], strides = [1, 1]} : vector<4x128xf32> to vector<4x32xf32>
    %222 = vector.extract_strided_slice %219 {offsets = [0, 64], sizes = [4, 32], strides = [1, 1]} : vector<4x128xf32> to vector<4x32xf32>
    %223 = vector.extract_strided_slice %218 {offsets = [0, 96], sizes = [4, 32], strides = [1, 1]} : vector<4x128xf32> to vector<4x32xf32>
    %224 = arith.mulf %221, %206 : vector<4x32xf32>
    %225 = arith.mulf %220, %222 : vector<4x32xf32>
    %226 = arith.addf %224, %225 : vector<4x32xf32>
    %227 = math.tanh %226 : vector<4x32xf32>
    %228 = arith.mulf %223, %227 : vector<4x32xf32>
    %c0_107 = arith.constant 0 : index
    %c0_108 = arith.constant 0 : index
    %229 = vector.load %arg12[%c0_107, %c0_108] : memref<4x64xf32, #tpu.memory_space<vmem>>, vector<4x32xf32>
    tpu.vector_store %arg12[%c0_107, %c0_108], %81 {strides = array<i32>} : memref<4x64xf32, #tpu.memory_space<vmem>>, vector<4x32xf32>,
    %c0_109 = arith.constant 0 : index
    %c32_110 = arith.constant 32 : index
    %230 = vector.load %arg12[%c0_109, %c32_110] : memref<4x64xf32, #tpu.memory_space<vmem>>, vector<4x32xf32>
    tpu.vector_store %arg12[%c0_109, %c32_110], %228 {strides = array<i32>} : memref<4x64xf32, #tpu.memory_space<vmem>>, vector<4x32xf32>,
    %c0_111 = arith.constant 0 : index
    %c0_112 = arith.constant 0 : index
    %231 = vector.load %arg12[%c0_111, %c0_112] : memref<4x64xf32, #tpu.memory_space<vmem>>, vector<4x64xf32>
    %cst_113 = arith.constant dense<0.000000e+00> : vector<4x128xf32>
    %232 = tpu.matmul %231, %183, %cst_113 {dimension_numbers = #tpu.dot_dimension_numbers<[1], [0], [0], [1], [0, 0, 1, 1], [], []>} : vector<4x64xf32>, vector<64x128xf32>, vector<4x128xf32> -> vector<4x128xf32>
    %233 = arith.addf %232, %186 : vector<4x128xf32>
    %234 = arith.negf %233 : vector<4x128xf32>
    %235 = math.exp %234 : vector<4x128xf32>
    %cst_114 = arith.constant 1.000000e+00 : f32
    %236 = vector.broadcast %cst_114 : f32 to vector<4x128xf32>
    %237 = arith.addf %236, %235 : vector<4x128xf32>
    %238 = arith.divf %236, %237 : vector<4x128xf32>
    %239 = math.tanh %233 : vector<4x128xf32>
    %240 = vector.extract_strided_slice %238 {offsets = [0, 0], sizes = [4, 32], strides = [1, 1]} : vector<4x128xf32> to vector<4x32xf32>
    %241 = vector.extract_strided_slice %238 {offsets = [0, 32], sizes = [4, 32], strides = [1, 1]} : vector<4x128xf32> to vector<4x32xf32>
    %242 = vector.extract_strided_slice %239 {offsets = [0, 64], sizes = [4, 32], strides = [1, 1]} : vector<4x128xf32> to vector<4x32xf32>
    %243 = vector.extract_strided_slice %238 {offsets = [0, 96], sizes = [4, 32], strides = [1, 1]} : vector<4x128xf32> to vector<4x32xf32>
    %244 = arith.mulf %241, %226 : vector<4x32xf32>
    %245 = arith.mulf %240, %242 : vector<4x32xf32>
    %246 = arith.addf %244, %245 : vector<4x32xf32>
    %247 = math.tanh %246 : vector<4x32xf32>
    %248 = arith.mulf %243, %247 : vector<4x32xf32>
    %c0_115 = arith.constant 0 : index
    %c0_116 = arith.constant 0 : index
    %249 = vector.load %arg12[%c0_115, %c0_116] : memref<4x64xf32, #tpu.memory_space<vmem>>, vector<4x32xf32>
    tpu.vector_store %arg12[%c0_115, %c0_116], %101 {strides = array<i32>} : memref<4x64xf32, #tpu.memory_space<vmem>>, vector<4x32xf32>,
    %c0_117 = arith.constant 0 : index
    %c32_118 = arith.constant 32 : index
    %250 = vector.load %arg12[%c0_117, %c32_118] : memref<4x64xf32, #tpu.memory_space<vmem>>, vector<4x32xf32>
    tpu.vector_store %arg12[%c0_117, %c32_118], %248 {strides = array<i32>} : memref<4x64xf32, #tpu.memory_space<vmem>>, vector<4x32xf32>,
    %c0_119 = arith.constant 0 : index
    %c0_120 = arith.constant 0 : index
    %251 = vector.load %arg12[%c0_119, %c0_120] : memref<4x64xf32, #tpu.memory_space<vmem>>, vector<4x64xf32>
    %cst_121 = arith.constant dense<0.000000e+00> : vector<4x128xf32>
    %252 = tpu.matmul %251, %183, %cst_121 {dimension_numbers = #tpu.dot_dimension_numbers<[1], [0], [0], [1], [0, 0, 1, 1], [], []>} : vector<4x64xf32>, vector<64x128xf32>, vector<4x128xf32> -> vector<4x128xf32>
    %253 = arith.addf %252, %186 : vector<4x128xf32>
    %254 = arith.negf %253 : vector<4x128xf32>
    %255 = math.exp %254 : vector<4x128xf32>
    %cst_122 = arith.constant 1.000000e+00 : f32
    %256 = vector.broadcast %cst_122 : f32 to vector<4x128xf32>
    %257 = arith.addf %256, %255 : vector<4x128xf32>
    %258 = arith.divf %256, %257 : vector<4x128xf32>
    %259 = math.tanh %253 : vector<4x128xf32>
    %260 = vector.extract_strided_slice %258 {offsets = [0, 0], sizes = [4, 32], strides = [1, 1]} : vector<4x128xf32> to vector<4x32xf32>
    %261 = vector.extract_strided_slice %258 {offsets = [0, 32], sizes = [4, 32], strides = [1, 1]} : vector<4x128xf32> to vector<4x32xf32>
    %262 = vector.extract_strided_slice %259 {offsets = [0, 64], sizes = [4, 32], strides = [1, 1]} : vector<4x128xf32> to vector<4x32xf32>
    %263 = vector.extract_strided_slice %258 {offsets = [0, 96], sizes = [4, 32], strides = [1, 1]} : vector<4x128xf32> to vector<4x32xf32>
    %264 = arith.mulf %261, %246 : vector<4x32xf32>
    %265 = arith.mulf %260, %262 : vector<4x32xf32>
    %266 = arith.addf %264, %265 : vector<4x32xf32>
    %267 = math.tanh %266 : vector<4x32xf32>
    %268 = arith.mulf %263, %267 : vector<4x32xf32>
    %c0_123 = arith.constant 0 : index
    %c0_124 = arith.constant 0 : index
    %269 = vector.load %arg12[%c0_123, %c0_124] : memref<4x64xf32, #tpu.memory_space<vmem>>, vector<4x32xf32>
    tpu.vector_store %arg12[%c0_123, %c0_124], %121 {strides = array<i32>} : memref<4x64xf32, #tpu.memory_space<vmem>>, vector<4x32xf32>,
    %c0_125 = arith.constant 0 : index
    %c32_126 = arith.constant 32 : index
    %270 = vector.load %arg12[%c0_125, %c32_126] : memref<4x64xf32, #tpu.memory_space<vmem>>, vector<4x32xf32>
    tpu.vector_store %arg12[%c0_125, %c32_126], %268 {strides = array<i32>} : memref<4x64xf32, #tpu.memory_space<vmem>>, vector<4x32xf32>,
    %c0_127 = arith.constant 0 : index
    %c0_128 = arith.constant 0 : index
    %271 = vector.load %arg12[%c0_127, %c0_128] : memref<4x64xf32, #tpu.memory_space<vmem>>, vector<4x64xf32>
    %cst_129 = arith.constant dense<0.000000e+00> : vector<4x128xf32>
    %272 = tpu.matmul %271, %183, %cst_129 {dimension_numbers = #tpu.dot_dimension_numbers<[1], [0], [0], [1], [0, 0, 1, 1], [], []>} : vector<4x64xf32>, vector<64x128xf32>, vector<4x128xf32> -> vector<4x128xf32>
    %273 = arith.addf %272, %186 : vector<4x128xf32>
    %274 = arith.negf %273 : vector<4x128xf32>
    %275 = math.exp %274 : vector<4x128xf32>
    %cst_130 = arith.constant 1.000000e+00 : f32
    %276 = vector.broadcast %cst_130 : f32 to vector<4x128xf32>
    %277 = arith.addf %276, %275 : vector<4x128xf32>
    %278 = arith.divf %276, %277 : vector<4x128xf32>
    %279 = math.tanh %273 : vector<4x128xf32>
    %280 = vector.extract_strided_slice %278 {offsets = [0, 0], sizes = [4, 32], strides = [1, 1]} : vector<4x128xf32> to vector<4x32xf32>
    %281 = vector.extract_strided_slice %278 {offsets = [0, 32], sizes = [4, 32], strides = [1, 1]} : vector<4x128xf32> to vector<4x32xf32>
    %282 = vector.extract_strided_slice %279 {offsets = [0, 64], sizes = [4, 32], strides = [1, 1]} : vector<4x128xf32> to vector<4x32xf32>
    %283 = vector.extract_strided_slice %278 {offsets = [0, 96], sizes = [4, 32], strides = [1, 1]} : vector<4x128xf32> to vector<4x32xf32>
    %284 = arith.mulf %281, %266 : vector<4x32xf32>
    %285 = arith.mulf %280, %282 : vector<4x32xf32>
    %286 = arith.addf %284, %285 : vector<4x32xf32>
    %287 = math.tanh %286 : vector<4x32xf32>
    %288 = arith.mulf %283, %287 : vector<4x32xf32>
    %c0_131 = arith.constant 0 : index
    %c0_132 = arith.constant 0 : index
    %289 = vector.load %arg12[%c0_131, %c0_132] : memref<4x64xf32, #tpu.memory_space<vmem>>, vector<4x32xf32>
    tpu.vector_store %arg12[%c0_131, %c0_132], %141 {strides = array<i32>} : memref<4x64xf32, #tpu.memory_space<vmem>>, vector<4x32xf32>,
    %c0_133 = arith.constant 0 : index
    %c32_134 = arith.constant 32 : index
    %290 = vector.load %arg12[%c0_133, %c32_134] : memref<4x64xf32, #tpu.memory_space<vmem>>, vector<4x32xf32>
    tpu.vector_store %arg12[%c0_133, %c32_134], %288 {strides = array<i32>} : memref<4x64xf32, #tpu.memory_space<vmem>>, vector<4x32xf32>,
    %c0_135 = arith.constant 0 : index
    %c0_136 = arith.constant 0 : index
    %291 = vector.load %arg12[%c0_135, %c0_136] : memref<4x64xf32, #tpu.memory_space<vmem>>, vector<4x64xf32>
    %cst_137 = arith.constant dense<0.000000e+00> : vector<4x128xf32>
    %292 = tpu.matmul %291, %183, %cst_137 {dimension_numbers = #tpu.dot_dimension_numbers<[1], [0], [0], [1], [0, 0, 1, 1], [], []>} : vector<4x64xf32>, vector<64x128xf32>, vector<4x128xf32> -> vector<4x128xf32>
    %293 = arith.addf %292, %186 : vector<4x128xf32>
    %294 = arith.negf %293 : vector<4x128xf32>
    %295 = math.exp %294 : vector<4x128xf32>
    %cst_138 = arith.constant 1.000000e+00 : f32
    %296 = vector.broadcast %cst_138 : f32 to vector<4x128xf32>
    %297 = arith.addf %296, %295 : vector<4x128xf32>
    %298 = arith.divf %296, %297 : vector<4x128xf32>
    %299 = math.tanh %293 : vector<4x128xf32>
    %300 = vector.extract_strided_slice %298 {offsets = [0, 0], sizes = [4, 32], strides = [1, 1]} : vector<4x128xf32> to vector<4x32xf32>
    %301 = vector.extract_strided_slice %298 {offsets = [0, 32], sizes = [4, 32], strides = [1, 1]} : vector<4x128xf32> to vector<4x32xf32>
    %302 = vector.extract_strided_slice %299 {offsets = [0, 64], sizes = [4, 32], strides = [1, 1]} : vector<4x128xf32> to vector<4x32xf32>
    %303 = vector.extract_strided_slice %298 {offsets = [0, 96], sizes = [4, 32], strides = [1, 1]} : vector<4x128xf32> to vector<4x32xf32>
    %304 = arith.mulf %301, %286 : vector<4x32xf32>
    %305 = arith.mulf %300, %302 : vector<4x32xf32>
    %306 = arith.addf %304, %305 : vector<4x32xf32>
    %307 = math.tanh %306 : vector<4x32xf32>
    %308 = arith.mulf %303, %307 : vector<4x32xf32>
    %c0_139 = arith.constant 0 : index
    %c0_140 = arith.constant 0 : index
    %309 = vector.load %arg12[%c0_139, %c0_140] : memref<4x64xf32, #tpu.memory_space<vmem>>, vector<4x32xf32>
    tpu.vector_store %arg12[%c0_139, %c0_140], %161 {strides = array<i32>} : memref<4x64xf32, #tpu.memory_space<vmem>>, vector<4x32xf32>,
    %c0_141 = arith.constant 0 : index
    %c32_142 = arith.constant 32 : index
    %310 = vector.load %arg12[%c0_141, %c32_142] : memref<4x64xf32, #tpu.memory_space<vmem>>, vector<4x32xf32>
    tpu.vector_store %arg12[%c0_141, %c32_142], %308 {strides = array<i32>} : memref<4x64xf32, #tpu.memory_space<vmem>>, vector<4x32xf32>,
    %c0_143 = arith.constant 0 : index
    %c0_144 = arith.constant 0 : index
    %311 = vector.load %arg12[%c0_143, %c0_144] : memref<4x64xf32, #tpu.memory_space<vmem>>, vector<4x64xf32>
    %cst_145 = arith.constant dense<0.000000e+00> : vector<4x128xf32>
    %312 = tpu.matmul %311, %183, %cst_145 {dimension_numbers = #tpu.dot_dimension_numbers<[1], [0], [0], [1], [0, 0, 1, 1], [], []>} : vector<4x64xf32>, vector<64x128xf32>, vector<4x128xf32> -> vector<4x128xf32>
    %313 = arith.addf %312, %186 : vector<4x128xf32>
    %314 = arith.negf %313 : vector<4x128xf32>
    %315 = math.exp %314 : vector<4x128xf32>
    %cst_146 = arith.constant 1.000000e+00 : f32
    %316 = vector.broadcast %cst_146 : f32 to vector<4x128xf32>
    %317 = arith.addf %316, %315 : vector<4x128xf32>
    %318 = arith.divf %316, %317 : vector<4x128xf32>
    %319 = math.tanh %313 : vector<4x128xf32>
    %320 = vector.extract_strided_slice %318 {offsets = [0, 0], sizes = [4, 32], strides = [1, 1]} : vector<4x128xf32> to vector<4x32xf32>
    %321 = vector.extract_strided_slice %318 {offsets = [0, 32], sizes = [4, 32], strides = [1, 1]} : vector<4x128xf32> to vector<4x32xf32>
    %322 = vector.extract_strided_slice %319 {offsets = [0, 64], sizes = [4, 32], strides = [1, 1]} : vector<4x128xf32> to vector<4x32xf32>
    %323 = vector.extract_strided_slice %318 {offsets = [0, 96], sizes = [4, 32], strides = [1, 1]} : vector<4x128xf32> to vector<4x32xf32>
    %324 = arith.mulf %321, %306 : vector<4x32xf32>
    %325 = arith.mulf %320, %322 : vector<4x32xf32>
    %326 = arith.addf %324, %325 : vector<4x32xf32>
    %327 = math.tanh %326 : vector<4x32xf32>
    %328 = arith.mulf %323, %327 : vector<4x32xf32>
    %c0_147 = arith.constant 0 : index
    %c0_148 = arith.constant 0 : index
    %329 = vector.load %arg12[%c0_147, %c0_148] : memref<4x64xf32, #tpu.memory_space<vmem>>, vector<4x32xf32>
    tpu.vector_store %arg12[%c0_147, %c0_148], %181 {strides = array<i32>} : memref<4x64xf32, #tpu.memory_space<vmem>>, vector<4x32xf32>,
    %c0_149 = arith.constant 0 : index
    %c32_150 = arith.constant 32 : index
    %330 = vector.load %arg12[%c0_149, %c32_150] : memref<4x64xf32, #tpu.memory_space<vmem>>, vector<4x32xf32>
    tpu.vector_store %arg12[%c0_149, %c32_150], %328 {strides = array<i32>} : memref<4x64xf32, #tpu.memory_space<vmem>>, vector<4x32xf32>,
    %c0_151 = arith.constant 0 : index
    %c0_152 = arith.constant 0 : index
    %331 = vector.load %arg12[%c0_151, %c0_152] : memref<4x64xf32, #tpu.memory_space<vmem>>, vector<4x64xf32>
    %cst_153 = arith.constant dense<0.000000e+00> : vector<4x128xf32>
    %332 = tpu.matmul %331, %183, %cst_153 {dimension_numbers = #tpu.dot_dimension_numbers<[1], [0], [0], [1], [0, 0, 1, 1], [], []>} : vector<4x64xf32>, vector<64x128xf32>, vector<4x128xf32> -> vector<4x128xf32>
    %333 = arith.addf %332, %186 : vector<4x128xf32>
    %334 = arith.negf %333 : vector<4x128xf32>
    %335 = math.exp %334 : vector<4x128xf32>
    %cst_154 = arith.constant 1.000000e+00 : f32
    %336 = vector.broadcast %cst_154 : f32 to vector<4x128xf32>
    %337 = arith.addf %336, %335 : vector<4x128xf32>
    %338 = arith.divf %336, %337 : vector<4x128xf32>
    %339 = math.tanh %333 : vector<4x128xf32>
    %340 = vector.extract_strided_slice %338 {offsets = [0, 0], sizes = [4, 32], strides = [1, 1]} : vector<4x128xf32> to vector<4x32xf32>
    %341 = vector.extract_strided_slice %338 {offsets = [0, 32], sizes = [4, 32], strides = [1, 1]} : vector<4x128xf32> to vector<4x32xf32>
    %342 = vector.extract_strided_slice %339 {offsets = [0, 64], sizes = [4, 32], strides = [1, 1]} : vector<4x128xf32> to vector<4x32xf32>
    %343 = vector.extract_strided_slice %338 {offsets = [0, 96], sizes = [4, 32], strides = [1, 1]} : vector<4x128xf32> to vector<4x32xf32>
    %344 = arith.mulf %341, %326 : vector<4x32xf32>
    %345 = arith.mulf %340, %342 : vector<4x32xf32>
    %346 = arith.addf %344, %345 : vector<4x32xf32>
    %347 = math.tanh %346 : vector<4x32xf32>
    %348 = arith.mulf %343, %347 : vector<4x32xf32>
    %c4_155 = arith.constant 4 : index
    %c0_156 = arith.constant 0 : index
    %349 = vector.load %arg10[%c4_155, %c0_156] : memref<8x32xf32, #tpu.memory_space<vmem>>, vector<4x32xf32>
    tpu.vector_store %arg10[%c4_155, %c0_156], %348 {strides = array<i32>} : memref<8x32xf32, #tpu.memory_space<vmem>>, vector<4x32xf32>,
    %c0_157 = arith.constant 0 : index
    %c0_158 = arith.constant 0 : index
    %350 = vector.load %arg10[%c0_157, %c0_158] : memref<8x32xf32, #tpu.memory_space<vmem>>, vector<8x32xf32>
    %cst_159 = arith.constant 0.000000e+00 : f32
    %351 = vector.broadcast %cst_159 : f32 to vector<8x32xf32>
    %352 = arith.maximumf %350, %351 : vector<8x32xf32>
    %c0_160 = arith.constant 0 : index
    %c0_161 = arith.constant 0 : index
    %353 = vector.load %arg5[%c0_160, %c0_161] : memref<32x128xf32, #tpu.memory_space<vmem>>, vector<32x128xf32>
    %cst_162 = arith.constant dense<0.000000e+00> : vector<8x128xf32>
    %354 = tpu.matmul %352, %353, %cst_162 {dimension_numbers = #tpu.dot_dimension_numbers<[1], [0], [0], [1], [0, 0, 1, 1], [], []>} : vector<8x32xf32>, vector<32x128xf32>, vector<8x128xf32> -> vector<8x128xf32>
    %c0_163 = arith.constant 0 : index
    %c0_164 = arith.constant 0 : index
    %355 = vector.load %arg6[%c0_163, %c0_164] : memref<1x128xf32, #tpu.memory_space<vmem>>, vector<1x128xf32>
    %356 = vector.broadcast %355 : vector<1x128xf32> to vector<8x128xf32>
    %357 = arith.addf %354, %356 : vector<8x128xf32>
    %cst_165 = arith.constant 0.000000e+00 : f32
    %358 = vector.broadcast %cst_165 : f32 to vector<8x128xf32>
    %359 = arith.maximumf %357, %358 : vector<8x128xf32>
    %c0_166 = arith.constant 0 : index
    %c0_167 = arith.constant 0 : index
    %360 = vector.load %arg7[%c0_166, %c0_167] : memref<128x8xf32, #tpu.memory_space<vmem>>, vector<128x8xf32>
    %cst_168 = arith.constant dense<0.000000e+00> : vector<8x8xf32>
    %361 = tpu.matmul %359, %360, %cst_168 {dimension_numbers = #tpu.dot_dimension_numbers<[1], [0], [0], [1], [0, 0, 1, 1], [], []>} : vector<8x128xf32>, vector<128x8xf32>, vector<8x8xf32> -> vector<8x8xf32>
    %c0_169 = arith.constant 0 : index
    %c0_170 = arith.constant 0 : index
    %362 = vector.load %arg8[%c0_169, %c0_170] : memref<1x8xf32, #tpu.memory_space<vmem>>, vector<1x8xf32>
    %363 = vector.broadcast %362 : vector<1x8xf32> to vector<8x8xf32>
    %364 = arith.addf %361, %363 : vector<8x8xf32>
    %c0_171 = arith.constant 0 : index
    %c0_172 = arith.constant 0 : index
    %365 = vector.load %arg9[%c0_171, %c0_172] : memref<8x8xf32, #tpu.memory_space<vmem>>, vector<8x8xf32>
    tpu.vector_store %arg9[%c0_171, %c0_172], %364 {strides = array<i32>} : memref<8x8xf32, #tpu.memory_space<vmem>>, vector<8x8xf32>,
    return
  }
}

</mosaic_0001>

<llo_original>
// kernel: lstm_classification_forward.1
$region0: #{lstm_classification_forward.1}
  #allocation0 [shape = 'u32[]', space=smem, size = 0x4, offset = 0x4, fixed_abs, tag = 'smem constant byte address 0x4 - core index']
  #allocation1 [shape = 'u32[72,128]{1,0:T(1,128)}', space=vmem, size = 0x9000, scoped, tag = 'internal scratch']
  #allocation2 [shape = 'f32[8,32]{1,0:T(8,128)}', space=vmem, size = 0x1000, scoped, tag = 'scratch operand']
  #allocation3 [shape = 'f32[4,48]{1,0:T(4,128)}', space=vmem, size = 0x800, scoped, tag = 'scratch operand']
  #allocation4 [shape = 'f32[4,64]{1,0:T(4,128)}', space=vmem, size = 0x800, scoped, tag = 'scratch operand']
  %s0 = inlined_call_operand.vmem [shape: f32[8,4,16], index: 0, kind: input, shape index: {}]
  %s1 = inlined_call_operand.vmem [shape: f32[48,128], index: 1, kind: input, shape index: {}]
  %s2 = inlined_call_operand.vmem [shape: f32[64,128], index: 2, kind: input, shape index: {}]
  %s3 = inlined_call_operand.vmem [shape: f32[1,128], index: 3, kind: input, shape index: {}]
  %s4 = inlined_call_operand.vmem [shape: f32[1,128], index: 4, kind: input, shape index: {}]
  %s5 = inlined_call_operand.vmem [shape: f32[32,128], index: 5, kind: input, shape index: {}]
  %s6 = inlined_call_operand.vmem [shape: f32[1,128], index: 6, kind: input, shape index: {}]
  %s7 = inlined_call_operand.vmem [shape: f32[128,8], index: 7, kind: input, shape index: {}]
  %s8 = inlined_call_operand.vmem [shape: f32[1,8], index: 8, kind: input, shape index: {}]
  %s9 = inlined_call_operand.hbm [shape: f32[8,8], index: 9, kind: output, shape index: {}]
  %s10 = sld [smem:[#allocation0]]
  $region46: #{lstm_classification_forward.1} parent=0
    _
  %s12 = ssub.s32 1, %s10
  %s13 = scalar_select 0, %s12, %s10
  $region1: #{lstm_classification_forward.1} parent=0
    #allocation5 [shape = 'u8[4096]{0}', space=vmem, size = 0x1000, scoped, tag = 'output window, operand 0, single buffered']
    #allocation6 [shape = 's32[1]{0}', space=sflag, size = 0x4, scoped, tag = 'scoped memory for lstm_classification_forward.1']
    %14 = vsyncpa [#allocation6], 0
    // Predicated region
    $region2: #{lstm_classification_forward.1} parent=1 // pred_check
      _
    $region3: #{lstm_classification_forward.1} parent=1 // pred_check_branch
      %16 = sbr.rel (0) target = $region5
    $region4: #{lstm_classification_forward.1} parent=1 // pred_region
      _
    $region5: #{lstm_classification_forward.1} parent=1 // pred_fallthru
      _
    // Predicated region
    $region6: #{lstm_classification_forward.1} parent=1 // pred_check
      _
    $region7: #{lstm_classification_forward.1} parent=1 // pred_check_branch
      %18 = sbr.rel (0) target = $region9
    $region8: #{lstm_classification_forward.1} parent=1 // pred_region
      _
    $region9: #{lstm_classification_forward.1} parent=1 // pred_fallthru
      _
    // Predicated region
    $region10: #{lstm_classification_forward.1} parent=1 // pred_check
      _
    $region11: #{lstm_classification_forward.1} parent=1 // pred_check_branch
      %20 = sbr.rel (0) target = $region13
    $region12: #{lstm_classification_forward.1} parent=1 // pred_region
      _
    $region13: #{lstm_classification_forward.1} parent=1 // pred_fallthru
      _
    // Predicated region
    $region14: #{lstm_classification_forward.1} parent=1 // pred_check
      _
    $region15: #{lstm_classification_forward.1} parent=1 // pred_check_branch
      %22 = sbr.rel (0) target = $region17
    $region16: #{lstm_classification_forward.1} parent=1 // pred_region
      _
    $region17: #{lstm_classification_forward.1} parent=1 // pred_fallthru
      _
    // Predicated region
    $region18: #{lstm_classification_forward.1} parent=1 // pred_check
      _
    $region19: #{lstm_classification_forward.1} parent=1 // pred_check_branch
      %24 = sbr.rel (0) target = $region21
    $region20: #{lstm_classification_forward.1} parent=1 // pred_region
      _
    $region21: #{lstm_classification_forward.1} parent=1 // pred_fallthru
      _
    // Predicated region
    $region22: #{lstm_classification_forward.1} parent=1 // pred_check
      _
    $region23: #{lstm_classification_forward.1} parent=1 // pred_check_branch
      %26 = sbr.rel (0) target = $region25
    $region24: #{lstm_classification_forward.1} parent=1 // pred_region
      _
    $region25: #{lstm_classification_forward.1} parent=1 // pred_fallthru
      _
    // Predicated region
    $region26: #{lstm_classification_forward.1} parent=1 // pred_check
      _
    $region27: #{lstm_classification_forward.1} parent=1 // pred_check_branch
      %28 = sbr.rel (0) target = $region29
    $region28: #{lstm_classification_forward.1} parent=1 // pred_region
      _
    $region29: #{lstm_classification_forward.1} parent=1 // pred_fallthru
      _
    // Predicated region
    $region30: #{lstm_classification_forward.1} parent=1 // pred_check
      _
    $region31: #{lstm_classification_forward.1} parent=1 // pred_check_branch
      %30 = sbr.rel (0) target = $region33
    $region32: #{lstm_classification_forward.1} parent=1 // pred_region
      _
    $region33: #{lstm_classification_forward.1} parent=1 // pred_fallthru
      _
    // Predicated region
    $region34: #{lstm_classification_forward.1} parent=1 // pred_check
      _
    $region35: #{lstm_classification_forward.1} parent=1 // pred_check_branch
      %32 = sbr.rel (0) target = $region37
    $region36: #{lstm_classification_forward.1} parent=1 // pred_region
      _
    $region37: #{lstm_classification_forward.1} parent=1 // pred_fallthru
      _
    %v33 = vld [vmem:[%s0] sm:$0xf]
    %s34 = scalar_lea.vmem %s0, 4
    %v35 = vld [vmem:[%s34] sm:$0xf]
    %s36 = scalar_lea.vmem %s0, 8
    %v37 = vld [vmem:[%s36] sm:$0xf]
    %s38 = scalar_lea.vmem %s0, 12
    %v39 = vld [vmem:[%s38] sm:$0xf]
    %s40 = scalar_lea.vmem %s0, 16
    %v41 = vld [vmem:[%s40] sm:$0xf]
    %s42 = scalar_lea.vmem %s0, 20
    %v43 = vld [vmem:[%s42] sm:$0xf]
    %s44 = scalar_lea.vmem %s0, 24
    %v45 = vld [vmem:[%s44] sm:$0xf]
    %s46 = scalar_lea.vmem %s0, 28
    %v47 = vld [vmem:[%s46] sm:$0xf]
    %v48 = vld [vmem:[%s1] sm:$0xff]
    %v49 = vld [vmem:[%s1 + $0x8] sm:$0xff]
    %v50 = vld [vmem:[%s1 + $0x10] sm:$0xff]
    %v51 = vld [vmem:[%s1 + $0x18] sm:$0xff]
    %v52 = vld [vmem:[%s1 + $0x20] sm:$0xff]
    %v53 = vld [vmem:[%s1 + $0x28] sm:$0xff]
    %v54 = vld [vmem:[%s3] sm:$0x1]
    %v56 = vperm.slane %v54, 0
    %vm58 = vcmask 125952
    %59 = vst.msk [vmem:[#allocation3] sm:$0xf] %vm58, %v33
    %vm60 = vcmask 388224
    %61 = vst.msk [vmem:[#allocation3] sm:$0xf] %vm60, 0.0
    %v62 = vld [vmem:[#allocation3] sm:$0xf]
    %vm63 = vcmask 392192
    %v65 = vsel %vm63, %v62, 0
    %67 = vmatpush.msra.mxu0 0.0
    %68 = vmatpush.msra.mxu0 0.0
    %69 = vmatpush.msra.mxu0 0.0
    %70 = vmatpush.msra.mxu0 0.0
    %71 = vmatpush.msra.mxu0 0.0
    %72 = vmatpush.msra.mxu0 0.0
    %73 = vmatpush.msra.mxu0 0.0
    %74 = vmatpush.msra.mxu0 0.0
    %75 = vmatpush.msra.mxu0 0.0
    %76 = vmatpush.msra.mxu0 0.0
    %77 = vmatpush.msra.mxu0 %v53
    %78 = vmatpush.msra.mxu0 %v52
    %79 = vmatpush.msra.mxu0 %v51
    %80 = vmatpush.msra.mxu0 %v50
    %81 = vmatpush.msra.mxu0 %v49
    %82 = vmatpush.msra.mxu0 %v48
    %83 = vmatmul.f32.gmra.mxu0 %v65
    %v84 = vpop.f32.mrf.mxu0
    %v85 = vadd.f32 %v56, %v84
    %86 = vdwg.mxu0
    %v87 = vxor.u32 %v85, 2147483648
    %v88 = vmul.f32 %v87, 1.442695
    %v89 = vpow.pop %v88
    %v90 = vadd.f32 %v89, 1.0
    %v91 = vrcp.pop %v90
    %v92 = vmul.f32 %v90, %v91
    %v93 = vsub.f32 1.0, %v92
    %v94 = vmul.f32 %v91, %v93
    %v95 = vadd.f32 %v91, %v94
    %vm96 = vweird.f32 %v90
    %vm97 = vweird.f32 %v91
    %vm98 = vmor %vm96, %vm97
    %v99 = vsel %vm98, %v91, %v95
    %v100 = vand.u32 2147483647, %v90
    %vm101 = vcmp.eq.f32.partialorder %v100, 8.507059e+37
    %v102 = vand.u32 %v90, 2147483648
    %v103 = vor.u32 1.1754944e-38, %v102
    %v104 = vsel %vm101, %v103, %v99
    %v105 = vmul.f32 1.0, %v104
    %v106 = vtanh.pop %v85
    %v107 = vmul.f32 %v105, 0.0
    %109 = vrot.lane.b32.xlu0 %v106, 64
    %v110 = vpop.permute.xlu0 %109
    %v112 = vmul.f32 %v105, %v110
    %114 = vrot.lane.b32.xlu0 %v112, 32
    %v115 = vpop.permute.xlu0 %114
    %v117 = vadd.f32 %v107, %v115
    %v118 = vtanh.pop %v117
    %120 = vrot.lane.b32.xlu0 %v118, 64
    %v121 = vpop.permute.xlu0 %120
    %v123 = vmul.f32 %v105, %v121
    %124 = vst.msk [vmem:[#allocation3] sm:$0xf] %vm58, %v35
    %126 = vrot.lane.b32.xlu0 %v123, 48
    %v127 = vpop.permute.xlu0 %126
    %129 = vst.msk [vmem:[#allocation3] sm:$0xf] %vm60, %v127
    %v130 = vld [vmem:[#allocation3] sm:$0xf]
    %v132 = vsel %vm63, %v130, 0
    %134 = vmatpush.msra.mxu0 0.0
    %135 = vmatpush.msra.mxu0 0.0
    %136 = vmatpush.msra.mxu0 0.0
    %137 = vmatpush.msra.mxu0 0.0
    %138 = vmatpush.msra.mxu0 0.0
    %139 = vmatpush.msra.mxu0 0.0
    %140 = vmatpush.msra.mxu0 0.0
    %141 = vmatpush.msra.mxu0 0.0
    %142 = vmatpush.msra.mxu0 0.0
    %143 = vmatpush.msra.mxu0 0.0
    %144 = vmatpush.msra.mxu0 %v53
    %145 = vmatpush.msra.mxu0 %v52
    %146 = vmatpush.msra.mxu0 %v51
    %147 = vmatpush.msra.mxu0 %v50
    %148 = vmatpush.msra.mxu0 %v49
    %149 = vmatpush.msra.mxu0 %v48
    %150 = vmatmul.f32.gmra.mxu0 %v132
    %v151 = vpop.f32.mrf.mxu0
    %v152 = vadd.f32 %v56, %v151
    %153 = vdwg.mxu0
    %v154 = vxor.u32 %v152, 2147483648
    %v155 = vmul.f32 %v154, 1.442695
    %v156 = vpow.pop %v155
    %v157 = vadd.f32 %v156, 1.0
    %v158 = vrcp.pop %v157
    %v159 = vmul.f32 %v157, %v158
    %v160 = vsub.f32 1.0, %v159
    %v161 = vmul.f32 %v158, %v160
    %v162 = vadd.f32 %v158, %v161
    %vm163 = vweird.f32 %v157
    %vm164 = vweird.f32 %v158
    %vm165 = vmor %vm163, %vm164
    %v166 = vsel %vm165, %v158, %v162
    %v167 = vand.u32 2147483647, %v157
    %vm168 = vcmp.eq.f32.partialorder %v167, 8.507059e+37
    %v169 = vand.u32 %v157, 2147483648
    %v170 = vor.u32 1.1754944e-38, %v169
    %v171 = vsel %vm168, %v170, %v166
    %v172 = vmul.f32 1.0, %v171
    %v173 = vtanh.pop %v152
    %v174 = vmul.f32 %v172, %v117
    %176 = vrot.lane.b32.xlu0 %v173, 64
    %v177 = vpop.permute.xlu0 %176
    %v179 = vmul.f32 %v172, %v177
    %181 = vrot.lane.b32.xlu0 %v179, 32
    %v182 = vpop.permute.xlu0 %181
    %v184 = vadd.f32 %v174, %v182
    %v185 = vtanh.pop %v184
    %187 = vrot.lane.b32.xlu0 %v185, 64
    %v188 = vpop.permute.xlu0 %187
    %v190 = vmul.f32 %v172, %v188
    %191 = vst.msk [vmem:[#allocation3] sm:$0xf] %vm58, %v37
    %193 = vrot.lane.b32.xlu0 %v190, 48
    %v194 = vpop.permute.xlu0 %193
    %196 = vst.msk [vmem:[#allocation3] sm:$0xf] %vm60, %v194
    %v197 = vld [vmem:[#allocation3] sm:$0xf]
    %v199 = vsel %vm63, %v197, 0
    %201 = vmatpush.msra.mxu0 0.0
    %202 = vmatpush.msra.mxu0 0.0
    %203 = vmatpush.msra.mxu0 0.0
    %204 = vmatpush.msra.mxu0 0.0
    %205 = vmatpush.msra.mxu0 0.0
    %206 = vmatpush.msra.mxu0 0.0
    %207 = vmatpush.msra.mxu0 0.0
    %208 = vmatpush.msra.mxu0 0.0
    %209 = vmatpush.msra.mxu0 0.0
    %210 = vmatpush.msra.mxu0 0.0
    %211 = vmatpush.msra.mxu0 %v53
    %212 = vmatpush.msra.mxu0 %v52
    %213 = vmatpush.msra.mxu0 %v51
    %214 = vmatpush.msra.mxu0 %v50
    %215 = vmatpush.msra.mxu0 %v49
    %216 = vmatpush.msra.mxu0 %v48
    %217 = vmatmul.f32.gmra.mxu0 %v199
    %v218 = vpop.f32.mrf.mxu0
    %v219 = vadd.f32 %v56, %v218
    %220 = vdwg.mxu0
    %v221 = vxor.u32 %v219, 2147483648
    %v222 = vmul.f32 %v221, 1.442695
    %v223 = vpow.pop %v222
    %v224 = vadd.f32 %v223, 1.0
    %v225 = vrcp.pop %v224
    %v226 = vmul.f32 %v224, %v225
    %v227 = vsub.f32 1.0, %v226
    %v228 = vmul.f32 %v225, %v227
    %v229 = vadd.f32 %v225, %v228
    %vm230 = vweird.f32 %v224
    %vm231 = vweird.f32 %v225
    %vm232 = vmor %vm230, %vm231
    %v233 = vsel %vm232, %v225, %v229
    %v234 = vand.u32 2147483647, %v224
    %vm235 = vcmp.eq.f32.partialorder %v234, 8.507059e+37
    %v236 = vand.u32 %v224, 2147483648
    %v237 = vor.u32 1.1754944e-38, %v236
    %v238 = vsel %vm235, %v237, %v233
    %v239 = vmul.f32 1.0, %v238
    %v240 = vtanh.pop %v219
    %v241 = vmul.f32 %v239, %v184
    %243 = vrot.lane.b32.xlu0 %v240, 64
    %v244 = vpop.permute.xlu0 %243
    %v246 = vmul.f32 %v239, %v244
    %248 = vrot.lane.b32.xlu0 %v246, 32
    %v249 = vpop.permute.xlu0 %248
    %v251 = vadd.f32 %v241, %v249
    %v252 = vtanh.pop %v251
    %254 = vrot.lane.b32.xlu0 %v252, 64
    %v255 = vpop.permute.xlu0 %254
    %v257 = vmul.f32 %v239, %v255
    %258 = vst.msk [vmem:[#allocation3] sm:$0xf] %vm58, %v39
    %260 = vrot.lane.b32.xlu0 %v257, 48
    %v261 = vpop.permute.xlu0 %260
    %263 = vst.msk [vmem:[#allocation3] sm:$0xf] %vm60, %v261
    %v264 = vld [vmem:[#allocation3] sm:$0xf]
    %v266 = vsel %vm63, %v264, 0
    %268 = vmatpush.msra.mxu0 0.0
    %269 = vmatpush.msra.mxu0 0.0
    %270 = vmatpush.msra.mxu0 0.0
    %271 = vmatpush.msra.mxu0 0.0
    %272 = vmatpush.msra.mxu0 0.0
    %273 = vmatpush.msra.mxu0 0.0
    %274 = vmatpush.msra.mxu0 0.0
    %275 = vmatpush.msra.mxu0 0.0
    %276 = vmatpush.msra.mxu0 0.0
    %277 = vmatpush.msra.mxu0 0.0
    %278 = vmatpush.msra.mxu0 %v53
    %279 = vmatpush.msra.mxu0 %v52
    %280 = vmatpush.msra.mxu0 %v51
    %281 = vmatpush.msra.mxu0 %v50
    %282 = vmatpush.msra.mxu0 %v49
    %283 = vmatpush.msra.mxu0 %v48
    %284 = vmatmul.f32.gmra.mxu0 %v266
    %v285 = vpop.f32.mrf.mxu0
    %v286 = vadd.f32 %v56, %v285
    %287 = vdwg.mxu0
    %v288 = vxor.u32 %v286, 2147483648
    %v289 = vmul.f32 %v288, 1.442695
    %v290 = vpow.pop %v289
    %v291 = vadd.f32 %v290, 1.0
    %v292 = vrcp.pop %v291
    %v293 = vmul.f32 %v291, %v292
    %v294 = vsub.f32 1.0, %v293
    %v295 = vmul.f32 %v292, %v294
    %v296 = vadd.f32 %v292, %v295
    %vm297 = vweird.f32 %v291
    %vm298 = vweird.f32 %v292
    %vm299 = vmor %vm297, %vm298
    %v300 = vsel %vm299, %v292, %v296
    %v301 = vand.u32 2147483647, %v291
    %vm302 = vcmp.eq.f32.partialorder %v301, 8.507059e+37
    %v303 = vand.u32 %v291, 2147483648
    %v304 = vor.u32 1.1754944e-38, %v303
    %v305 = vsel %vm302, %v304, %v300
    %v306 = vmul.f32 1.0, %v305
    %v307 = vtanh.pop %v286
    %v308 = vmul.f32 %v306, %v251
    %310 = vrot.lane.b32.xlu0 %v307, 64
    %v311 = vpop.permute.xlu0 %310
    %v313 = vmul.f32 %v306, %v311
    %315 = vrot.lane.b32.xlu0 %v313, 32
    %v316 = vpop.permute.xlu0 %315
    %v318 = vadd.f32 %v308, %v316
    %v319 = vtanh.pop %v318
    %321 = vrot.lane.b32.xlu0 %v319, 64
    %v322 = vpop.permute.xlu0 %321
    %v324 = vmul.f32 %v306, %v322
    %325 = vst.msk [vmem:[#allocation3] sm:$0xf] %vm58, %v41
    %327 = vrot.lane.b32.xlu0 %v324, 48
    %v328 = vpop.permute.xlu0 %327
    %330 = vst.msk [vmem:[#allocation3] sm:$0xf] %vm60, %v328
    %v331 = vld [vmem:[#allocation3] sm:$0xf]
    %v333 = vsel %vm63, %v331, 0
    %335 = vmatpush.msra.mxu0 0.0
    %336 = vmatpush.msra.mxu0 0.0
    %337 = vmatpush.msra.mxu0 0.0
    %338 = vmatpush.msra.mxu0 0.0
    %339 = vmatpush.msra.mxu0 0.0
    %340 = vmatpush.msra.mxu0 0.0
    %341 = vmatpush.msra.mxu0 0.0
    %342 = vmatpush.msra.mxu0 0.0
    %343 = vmatpush.msra.mxu0 0.0
    %344 = vmatpush.msra.mxu0 0.0
    %345 = vmatpush.msra.mxu0 %v53
    %346 = vmatpush.msra.mxu0 %v52
    %347 = vmatpush.msra.mxu0 %v51
    %348 = vmatpush.msra.mxu0 %v50
    %349 = vmatpush.msra.mxu0 %v49
    %350 = vmatpush.msra.mxu0 %v48
    %351 = vmatmul.f32.gmra.mxu0 %v333
    %v352 = vpop.f32.mrf.mxu0
    %v353 = vadd.f32 %v56, %v352
    %354 = vdwg.mxu0
    %v355 = vxor.u32 %v353, 2147483648
    %v356 = vmul.f32 %v355, 1.442695
    %v357 = vpow.pop %v356
    %v358 = vadd.f32 %v357, 1.0
    %v359 = vrcp.pop %v358
    %v360 = vmul.f32 %v358, %v359
    %v361 = vsub.f32 1.0, %v360
    %v362 = vmul.f32 %v359, %v361
    %v363 = vadd.f32 %v359, %v362
    %vm364 = vweird.f32 %v358
    %vm365 = vweird.f32 %v359
    %vm366 = vmor %vm364, %vm365
    %v367 = vsel %vm366, %v359, %v363
    %v368 = vand.u32 2147483647, %v358
    %vm369 = vcmp.eq.f32.partialorder %v368, 8.507059e+37
    %v370 = vand.u32 %v358, 2147483648
    %v371 = vor.u32 1.1754944e-38, %v370
    %v372 = vsel %vm369, %v371, %v367
    %v373 = vmul.f32 1.0, %v372
    %v374 = vtanh.pop %v353
    %v375 = vmul.f32 %v373, %v318
    %377 = vrot.lane.b32.xlu0 %v374, 64
    %v378 = vpop.permute.xlu0 %377
    %v380 = vmul.f32 %v373, %v378
    %382 = vrot.lane.b32.xlu0 %v380, 32
    %v383 = vpop.permute.xlu0 %382
    %v385 = vadd.f32 %v375, %v383
    %v386 = vtanh.pop %v385
    %388 = vrot.lane.b32.xlu0 %v386, 64
    %v389 = vpop.permute.xlu0 %388
    %v391 = vmul.f32 %v373, %v389
    %392 = vst.msk [vmem:[#allocation3] sm:$0xf] %vm58, %v43
    %394 = vrot.lane.b32.xlu0 %v391, 48
    %v395 = vpop.permute.xlu0 %394
    %397 = vst.msk [vmem:[#allocation3] sm:$0xf] %vm60, %v395
    %v398 = vld [vmem:[#allocation3] sm:$0xf]
    %v400 = vsel %vm63, %v398, 0
    %402 = vmatpush.msra.mxu0 0.0
    %403 = vmatpush.msra.mxu0 0.0
    %404 = vmatpush.msra.mxu0 0.0
    %405 = vmatpush.msra.mxu0 0.0
    %406 = vmatpush.msra.mxu0 0.0
    %407 = vmatpush.msra.mxu0 0.0
    %408 = vmatpush.msra.mxu0 0.0
    %409 = vmatpush.msra.mxu0 0.0
    %410 = vmatpush.msra.mxu0 0.0
    %411 = vmatpush.msra.mxu0 0.0
    %412 = vmatpush.msra.mxu0 %v53
    %413 = vmatpush.msra.mxu0 %v52
    %414 = vmatpush.msra.mxu0 %v51
    %415 = vmatpush.msra.mxu0 %v50
    %416 = vmatpush.msra.mxu0 %v49
    %417 = vmatpush.msra.mxu0 %v48
    %418 = vmatmul.f32.gmra.mxu0 %v400
    %v419 = vpop.f32.mrf.mxu0
    %v420 = vadd.f32 %v56, %v419
    %421 = vdwg.mxu0
    %v422 = vxor.u32 %v420, 2147483648
    %v423 = vmul.f32 %v422, 1.442695
    %v424 = vpow.pop %v423
    %v425 = vadd.f32 %v424, 1.0
    %v426 = vrcp.pop %v425
    %v427 = vmul.f32 %v425, %v426
    %v428 = vsub.f32 1.0, %v427
    %v429 = vmul.f32 %v426, %v428
    %v430 = vadd.f32 %v426, %v429
    %vm431 = vweird.f32 %v425
    %vm432 = vweird.f32 %v426
    %vm433 = vmor %vm431, %vm432
    %v434 = vsel %vm433, %v426, %v430
    %v435 = vand.u32 2147483647, %v425
    %vm436 = vcmp.eq.f32.partialorder %v435, 8.507059e+37
    %v437 = vand.u32 %v425, 2147483648
    %v438 = vor.u32 1.1754944e-38, %v437
    %v439 = vsel %vm436, %v438, %v434
    %v440 = vmul.f32 1.0, %v439
    %v441 = vtanh.pop %v420
    %v442 = vmul.f32 %v440, %v385
    %444 = vrot.lane.b32.xlu0 %v441, 64
    %v445 = vpop.permute.xlu0 %444
    %v447 = vmul.f32 %v440, %v445
    %449 = vrot.lane.b32.xlu0 %v447, 32
    %v450 = vpop.permute.xlu0 %449
    %v452 = vadd.f32 %v442, %v450
    %v453 = vtanh.pop %v452
    %455 = vrot.lane.b32.xlu0 %v453, 64
    %v456 = vpop.permute.xlu0 %455
    %v458 = vmul.f32 %v440, %v456
    %459 = vst.msk [vmem:[#allocation3] sm:$0xf] %vm58, %v45
    %461 = vrot.lane.b32.xlu0 %v458, 48
    %v462 = vpop.permute.xlu0 %461
    %464 = vst.msk [vmem:[#allocation3] sm:$0xf] %vm60, %v462
    %v465 = vld [vmem:[#allocation3] sm:$0xf]
    %v467 = vsel %vm63, %v465, 0
    %469 = vmatpush.msra.mxu0 0.0
    %470 = vmatpush.msra.mxu0 0.0
    %471 = vmatpush.msra.mxu0 0.0
    %472 = vmatpush.msra.mxu0 0.0
    %473 = vmatpush.msra.mxu0 0.0
    %474 = vmatpush.msra.mxu0 0.0
    %475 = vmatpush.msra.mxu0 0.0
    %476 = vmatpush.msra.mxu0 0.0
    %477 = vmatpush.msra.mxu0 0.0
    %478 = vmatpush.msra.mxu0 0.0
    %479 = vmatpush.msra.mxu0 %v53
    %480 = vmatpush.msra.mxu0 %v52
    %481 = vmatpush.msra.mxu0 %v51
    %482 = vmatpush.msra.mxu0 %v50
    %483 = vmatpush.msra.mxu0 %v49
    %484 = vmatpush.msra.mxu0 %v48
    %485 = vmatmul.f32.gmra.mxu0 %v467
    %v486 = vpop.f32.mrf.mxu0
    %v487 = vadd.f32 %v56, %v486
    %488 = vdwg.mxu0
    %v489 = vxor.u32 %v487, 2147483648
    %v490 = vmul.f32 %v489, 1.442695
    %v491 = vpow.pop %v490
    %v492 = vadd.f32 %v491, 1.0
    %v493 = vrcp.pop %v492
    %v494 = vmul.f32 %v492, %v493
    %v495 = vsub.f32 1.0, %v494
    %v496 = vmul.f32 %v493, %v495
    %v497 = vadd.f32 %v493, %v496
    %vm498 = vweird.f32 %v492
    %vm499 = vweird.f32 %v493
    %vm500 = vmor %vm498, %vm499
    %v501 = vsel %vm500, %v493, %v497
    %v502 = vand.u32 2147483647, %v492
    %vm503 = vcmp.eq.f32.partialorder %v502, 8.507059e+37
    %v504 = vand.u32 %v492, 2147483648
    %v505 = vor.u32 1.1754944e-38, %v504
    %v506 = vsel %vm503, %v505, %v501
    %v507 = vmul.f32 1.0, %v506
    %v508 = vtanh.pop %v487
    %v509 = vmul.f32 %v507, %v452
    %511 = vrot.lane.b32.xlu0 %v508, 64
    %v512 = vpop.permute.xlu0 %511
    %v514 = vmul.f32 %v507, %v512
    %516 = vrot.lane.b32.xlu0 %v514, 32
    %v517 = vpop.permute.xlu0 %516
    %v519 = vadd.f32 %v509, %v517
    %v520 = vtanh.pop %v519
    %522 = vrot.lane.b32.xlu0 %v520, 64
    %v523 = vpop.permute.xlu0 %522
    %v525 = vmul.f32 %v507, %v523
    %526 = vst.msk [vmem:[#allocation3] sm:$0xf] %vm58, %v47
    %528 = vrot.lane.b32.xlu0 %v525, 48
    %v529 = vpop.permute.xlu0 %528
    %531 = vst.msk [vmem:[#allocation3] sm:$0xf] %vm60, %v529
    %v532 = vld [vmem:[#allocation3] sm:$0xf]
    %v534 = vsel %vm63, %v532, 0
    %536 = vmatpush.msra.mxu0 0.0
    %537 = vmatpush.msra.mxu0 0.0
    %538 = vmatpush.msra.mxu0 0.0
    %539 = vmatpush.msra.mxu0 0.0
    %540 = vmatpush.msra.mxu0 0.0
    %541 = vmatpush.msra.mxu0 0.0
    %542 = vmatpush.msra.mxu0 0.0
    %543 = vmatpush.msra.mxu0 0.0
    %544 = vmatpush.msra.mxu0 0.0
    %545 = vmatpush.msra.mxu0 0.0
    %546 = vmatpush.msra.mxu0 %v53
    %547 = vmatpush.msra.mxu0 %v52
    %548 = vmatpush.msra.mxu0 %v51
    %549 = vmatpush.msra.mxu0 %v50
    %550 = vmatpush.msra.mxu0 %v49
    %551 = vmatpush.msra.mxu0 %v48
    %552 = vmatmul.f32.gmra.mxu0 %v534
    %v553 = vpop.f32.mrf.mxu0
    %v554 = vadd.f32 %v56, %v553
    %555 = vdwg.mxu0
    %v556 = vxor.u32 %v554, 2147483648
    %v557 = vmul.f32 %v556, 1.442695
    %v558 = vpow.pop %v557
    %v559 = vadd.f32 %v558, 1.0
    %v560 = vrcp.pop %v559
    %v561 = vmul.f32 %v559, %v560
    %v562 = vsub.f32 1.0, %v561
    %v563 = vmul.f32 %v560, %v562
    %v564 = vadd.f32 %v560, %v563
    %vm565 = vweird.f32 %v559
    %vm566 = vweird.f32 %v560
    %vm567 = vmor %vm565, %vm566
    %v568 = vsel %vm567, %v560, %v564
    %v569 = vand.u32 2147483647, %v559
    %vm570 = vcmp.eq.f32.partialorder %v569, 8.507059e+37
    %v571 = vand.u32 %v559, 2147483648
    %v572 = vor.u32 1.1754944e-38, %v571
    %v573 = vsel %vm570, %v572, %v568
    %v574 = vmul.f32 1.0, %v573
    %v575 = vtanh.pop %v554
    %v576 = vmul.f32 %v574, %v519
    %578 = vrot.lane.b32.xlu0 %v575, 64
    %v579 = vpop.permute.xlu0 %578
    %v581 = vmul.f32 %v574, %v579
    %583 = vrot.lane.b32.xlu0 %v581, 32
    %v584 = vpop.permute.xlu0 %583
    %v586 = vadd.f32 %v576, %v584
    %v587 = vtanh.pop %v586
    %589 = vrot.lane.b32.xlu0 %v587, 64
    %v590 = vpop.permute.xlu0 %589
    %v592 = vmul.f32 %v574, %v590
    %594 = vrot.lane.b32.xlu0 %v592, 32
    %v595 = vpop.permute.xlu0 %594
    %vm597 = vcmask 257024
    %598 = vst.msk [vmem:[#allocation2] sm:$0xf] %vm597, %v595
    %v599 = vld [vmem:[%s2] sm:$0xff]
    %v600 = vld [vmem:[%s2 + $0x8] sm:$0xff]
    %v601 = vld [vmem:[%s2 + $0x10] sm:$0xff]
    %v602 = vld [vmem:[%s2 + $0x18] sm:$0xff]
    %v603 = vld [vmem:[%s2 + $0x20] sm:$0xff]
    %v604 = vld [vmem:[%s2 + $0x28] sm:$0xff]
    %v605 = vld [vmem:[%s2 + $0x30] sm:$0xff]
    %v606 = vld [vmem:[%s2 + $0x38] sm:$0xff]
    %v607 = vld [vmem:[%s4] sm:$0x1]
    %v609 = vperm.slane %v607, 0
    %611 = vrot.lane.b32.xlu0 %v123, 32
    %v612 = vpop.permute.xlu0 %611
    %614 = vst.msk [vmem:[#allocation4] sm:$0xf] %vm597, %v612
    %vm615 = vcmask 519424
    %616 = vst.msk [vmem:[#allocation4] sm:$0xf] %vm615, 0.0
    %v617 = vld [vmem:[#allocation4] sm:$0xf]
    %vm618 = vcmask 523264
    %v620 = vsel %vm618, %v617, 0
    %622 = vmatpush.msra.mxu0 0.0
    %623 = vmatpush.msra.mxu0 0.0
    %624 = vmatpush.msra.mxu0 0.0
    %625 = vmatpush.msra.mxu0 0.0
    %626 = vmatpush.msra.mxu0 0.0
    %627 = vmatpush.msra.mxu0 0.0
    %628 = vmatpush.msra.mxu0 0.0
    %629 = vmatpush.msra.mxu0 0.0
    %630 = vmatpush.msra.mxu0 %v606
    %631 = vmatpush.msra.mxu0 %v605
    %632 = vmatpush.msra.mxu0 %v604
    %633 = vmatpush.msra.mxu0 %v603
    %634 = vmatpush.msra.mxu0 %v602
    %635 = vmatpush.msra.mxu0 %v601
    %636 = vmatpush.msra.mxu0 %v600
    %637 = vmatpush.msra.mxu0 %v599
    %638 = vmatmul.f32.gmra.mxu0 %v620
    %v639 = vpop.f32.mrf.mxu0
    %v640 = vadd.f32 %v609, %v639
    %641 = vdwg.mxu0
    %v642 = vxor.u32 %v640, 2147483648
    %v643 = vmul.f32 %v642, 1.442695
    %v644 = vpow.pop %v643
    %v645 = vadd.f32 %v644, 1.0
    %v646 = vrcp.pop %v645
    %v647 = vmul.f32 %v645, %v646
    %v648 = vsub.f32 1.0, %v647
    %v649 = vmul.f32 %v646, %v648
    %v650 = vadd.f32 %v646, %v649
    %vm651 = vweird.f32 %v645
    %vm652 = vweird.f32 %v646
    %vm653 = vmor %vm651, %vm652
    %v654 = vsel %vm653, %v646, %v650
    %v655 = vand.u32 2147483647, %v645
    %vm656 = vcmp.eq.f32.partialorder %v655, 8.507059e+37
    %v657 = vand.u32 %v645, 2147483648
    %v658 = vor.u32 1.1754944e-38, %v657
    %v659 = vsel %vm656, %v658, %v654
    %v660 = vmul.f32 1.0, %v659
    %v661 = vtanh.pop %v640
    %v662 = vmul.f32 %v660, 0.0
    %664 = vrot.lane.b32.xlu0 %v661, 64
    %v665 = vpop.permute.xlu0 %664
    %v667 = vmul.f32 %v660, %v665
    %669 = vrot.lane.b32.xlu0 %v667, 32
    %v670 = vpop.permute.xlu0 %669
    %v672 = vadd.f32 %v662, %v670
    %v673 = vtanh.pop %v672
    %675 = vrot.lane.b32.xlu0 %v673, 64
    %v676 = vpop.permute.xlu0 %675
    %v678 = vmul.f32 %v660, %v676
    %679 = vrot.lane.b32.xlu0 %v190, 32
    %v680 = vpop.permute.xlu0 %679
    %682 = vst.msk [vmem:[#allocation4] sm:$0xf] %vm597, %v680
    %684 = vrot.lane.b32.xlu0 %v678, 64
    %v685 = vpop.permute.xlu0 %684
    %687 = vst.msk [vmem:[#allocation4] sm:$0xf] %vm615, %v685
    %v688 = vld [vmem:[#allocation4] sm:$0xf]
    %v690 = vsel %vm618, %v688, 0
    %692 = vmatpush.msra.mxu0 0.0
    %693 = vmatpush.msra.mxu0 0.0
    %694 = vmatpush.msra.mxu0 0.0
    %695 = vmatpush.msra.mxu0 0.0
    %696 = vmatpush.msra.mxu0 0.0
    %697 = vmatpush.msra.mxu0 0.0
    %698 = vmatpush.msra.mxu0 0.0
    %699 = vmatpush.msra.mxu0 0.0
    %700 = vmatpush.msra.mxu0 %v606
    %701 = vmatpush.msra.mxu0 %v605
    %702 = vmatpush.msra.mxu0 %v604
    %703 = vmatpush.msra.mxu0 %v603
    %704 = vmatpush.msra.mxu0 %v602
    %705 = vmatpush.msra.mxu0 %v601
    %706 = vmatpush.msra.mxu0 %v600
    %707 = vmatpush.msra.mxu0 %v599
    %708 = vmatmul.f32.gmra.mxu0 %v690
    %v709 = vpop.f32.mrf.mxu0
    %v710 = vadd.f32 %v609, %v709
    %711 = vdwg.mxu0
    %v712 = vxor.u32 %v710, 2147483648
    %v713 = vmul.f32 %v712, 1.442695
    %v714 = vpow.pop %v713
    %v715 = vadd.f32 %v714, 1.0
    %v716 = vrcp.pop %v715
    %v717 = vmul.f32 %v715, %v716
    %v718 = vsub.f32 1.0, %v717
    %v719 = vmul.f32 %v716, %v718
    %v720 = vadd.f32 %v716, %v719
    %vm721 = vweird.f32 %v715
    %vm722 = vweird.f32 %v716
    %vm723 = vmor %vm721, %vm722
    %v724 = vsel %vm723, %v716, %v720
    %v725 = vand.u32 2147483647, %v715
    %vm726 = vcmp.eq.f32.partialorder %v725, 8.507059e+37
    %v727 = vand.u32 %v715, 2147483648
    %v728 = vor.u32 1.1754944e-38, %v727
    %v729 = vsel %vm726, %v728, %v724
    %v730 = vmul.f32 1.0, %v729
    %v731 = vtanh.pop %v710
    %v732 = vmul.f32 %v730, %v672
    %734 = vrot.lane.b32.xlu0 %v731, 64
    %v735 = vpop.permute.xlu0 %734
    %v737 = vmul.f32 %v730, %v735
    %739 = vrot.lane.b32.xlu0 %v737, 32
    %v740 = vpop.permute.xlu0 %739
    %v742 = vadd.f32 %v732, %v740
    %v743 = vtanh.pop %v742
    %745 = vrot.lane.b32.xlu0 %v743, 64
    %v746 = vpop.permute.xlu0 %745
    %v748 = vmul.f32 %v730, %v746
    %749 = vrot.lane.b32.xlu0 %v257, 32
    %v750 = vpop.permute.xlu0 %749
    %752 = vst.msk [vmem:[#allocation4] sm:$0xf] %vm597, %v750
    %754 = vrot.lane.b32.xlu0 %v748, 64
    %v755 = vpop.permute.xlu0 %754
    %757 = vst.msk [vmem:[#allocation4] sm:$0xf] %vm615, %v755
    %v758 = vld [vmem:[#allocation4] sm:$0xf]
    %v760 = vsel %vm618, %v758, 0
    %762 = vmatpush.msra.mxu0 0.0
    %763 = vmatpush.msra.mxu0 0.0
    %764 = vmatpush.msra.mxu0 0.0
    %765 = vmatpush.msra.mxu0 0.0
    %766 = vmatpush.msra.mxu0 0.0
    %767 = vmatpush.msra.mxu0 0.0
    %768 = vmatpush.msra.mxu0 0.0
    %769 = vmatpush.msra.mxu0 0.0
    %770 = vmatpush.msra.mxu0 %v606
    %771 = vmatpush.msra.mxu0 %v605
    %772 = vmatpush.msra.mxu0 %v604
    %773 = vmatpush.msra.mxu0 %v603
    %774 = vmatpush.msra.mxu0 %v602
    %775 = vmatpush.msra.mxu0 %v601
    %776 = vmatpush.msra.mxu0 %v600
    %777 = vmatpush.msra.mxu0 %v599
    %778 = vmatmul.f32.gmra.mxu0 %v760
    %v779 = vpop.f32.mrf.mxu0
    %v780 = vadd.f32 %v609, %v779
    %781 = vdwg.mxu0
    %v782 = vxor.u32 %v780, 2147483648
    %v783 = vmul.f32 %v782, 1.442695
    %v784 = vpow.pop %v783
    %v785 = vadd.f32 %v784, 1.0
    %v786 = vrcp.pop %v785
    %v787 = vmul.f32 %v785, %v786
    %v788 = vsub.f32 1.0, %v787
    %v789 = vmul.f32 %v786, %v788
    %v790 = vadd.f32 %v786, %v789
    %vm791 = vweird.f32 %v785
    %vm792 = vweird.f32 %v786
    %vm793 = vmor %vm791, %vm792
    %v794 = vsel %vm793, %v786, %v790
    %v795 = vand.u32 2147483647, %v785
    %vm796 = vcmp.eq.f32.partialorder %v795, 8.507059e+37
    %v797 = vand.u32 %v785, 2147483648
    %v798 = vor.u32 1.1754944e-38, %v797
    %v799 = vsel %vm796, %v798, %v794
    %v800 = vmul.f32 1.0, %v799
    %v801 = vtanh.pop %v780
    %v802 = vmul.f32 %v800, %v742
    %804 = vrot.lane.b32.xlu0 %v801, 64
    %v805 = vpop.permute.xlu0 %804
    %v807 = vmul.f32 %v800, %v805
    %809 = vrot.lane.b32.xlu0 %v807, 32
    %v810 = vpop.permute.xlu0 %809
    %v812 = vadd.f32 %v802, %v810
    %v813 = vtanh.pop %v812
    %815 = vrot.lane.b32.xlu0 %v813, 64
    %v816 = vpop.permute.xlu0 %815
    %v818 = vmul.f32 %v800, %v816
    %819 = vrot.lane.b32.xlu0 %v324, 32
    %v820 = vpop.permute.xlu0 %819
    %822 = vst.msk [vmem:[#allocation4] sm:$0xf] %vm597, %v820
    %824 = vrot.lane.b32.xlu0 %v818, 64
    %v825 = vpop.permute.xlu0 %824
    %827 = vst.msk [vmem:[#allocation4] sm:$0xf] %vm615, %v825
    %v828 = vld [vmem:[#allocation4] sm:$0xf]
    %v830 = vsel %vm618, %v828, 0
    %832 = vmatpush.msra.mxu0 0.0
    %833 = vmatpush.msra.mxu0 0.0
    %834 = vmatpush.msra.mxu0 0.0
    %835 = vmatpush.msra.mxu0 0.0
    %836 = vmatpush.msra.mxu0 0.0
    %837 = vmatpush.msra.mxu0 0.0
    %838 = vmatpush.msra.mxu0 0.0
    %839 = vmatpush.msra.mxu0 0.0
    %840 = vmatpush.msra.mxu0 %v606
    %841 = vmatpush.msra.mxu0 %v605
    %842 = vmatpush.msra.mxu0 %v604
    %843 = vmatpush.msra.mxu0 %v603
    %844 = vmatpush.msra.mxu0 %v602
    %845 = vmatpush.msra.mxu0 %v601
    %846 = vmatpush.msra.mxu0 %v600
    %847 = vmatpush.msra.mxu0 %v599
    %848 = vmatmul.f32.gmra.mxu0 %v830
    %v849 = vpop.f32.mrf.mxu0
    %v850 = vadd.f32 %v609, %v849
    %851 = vdwg.mxu0
    %v852 = vxor.u32 %v850, 2147483648
    %v853 = vmul.f32 %v852, 1.442695
    %v854 = vpow.pop %v853
    %v855 = vadd.f32 %v854, 1.0
    %v856 = vrcp.pop %v855
    %v857 = vmul.f32 %v855, %v856
    %v858 = vsub.f32 1.0, %v857
    %v859 = vmul.f32 %v856, %v858
    %v860 = vadd.f32 %v856, %v859
    %vm861 = vweird.f32 %v855
    %vm862 = vweird.f32 %v856
    %vm863 = vmor %vm861, %vm862
    %v864 = vsel %vm863, %v856, %v860
    %v865 = vand.u32 2147483647, %v855
    %vm866 = vcmp.eq.f32.partialorder %v865, 8.507059e+37
    %v867 = vand.u32 %v855, 2147483648
    %v868 = vor.u32 1.1754944e-38, %v867
    %v869 = vsel %vm866, %v868, %v864
    %v870 = vmul.f32 1.0, %v869
    %v871 = vtanh.pop %v850
    %v872 = vmul.f32 %v870, %v812
    %874 = vrot.lane.b32.xlu0 %v871, 64
    %v875 = vpop.permute.xlu0 %874
    %v877 = vmul.f32 %v870, %v875
    %879 = vrot.lane.b32.xlu0 %v877, 32
    %v880 = vpop.permute.xlu0 %879
    %v882 = vadd.f32 %v872, %v880
    %v883 = vtanh.pop %v882
    %885 = vrot.lane.b32.xlu0 %v883, 64
    %v886 = vpop.permute.xlu0 %885
    %v888 = vmul.f32 %v870, %v886
    %889 = vrot.lane.b32.xlu0 %v391, 32
    %v890 = vpop.permute.xlu0 %889
    %892 = vst.msk [vmem:[#allocation4] sm:$0xf] %vm597, %v890
    %894 = vrot.lane.b32.xlu0 %v888, 64
    %v895 = vpop.permute.xlu0 %894
    %897 = vst.msk [vmem:[#allocation4] sm:$0xf] %vm615, %v895
    %v898 = vld [vmem:[#allocation4] sm:$0xf]
    %v900 = vsel %vm618, %v898, 0
    %902 = vmatpush.msra.mxu0 0.0
    %903 = vmatpush.msra.mxu0 0.0
    %904 = vmatpush.msra.mxu0 0.0
    %905 = vmatpush.msra.mxu0 0.0
    %906 = vmatpush.msra.mxu0 0.0
    %907 = vmatpush.msra.mxu0 0.0
    %908 = vmatpush.msra.mxu0 0.0
    %909 = vmatpush.msra.mxu0 0.0
    %910 = vmatpush.msra.mxu0 %v606
    %911 = vmatpush.msra.mxu0 %v605
    %912 = vmatpush.msra.mxu0 %v604
    %913 = vmatpush.msra.mxu0 %v603
    %914 = vmatpush.msra.mxu0 %v602
    %915 = vmatpush.msra.mxu0 %v601
    %916 = vmatpush.msra.mxu0 %v600
    %917 = vmatpush.msra.mxu0 %v599
    %918 = vmatmul.f32.gmra.mxu0 %v900
    %v919 = vpop.f32.mrf.mxu0
    %v920 = vadd.f32 %v609, %v919
    %921 = vdwg.mxu0
    %v922 = vxor.u32 %v920, 2147483648
    %v923 = vmul.f32 %v922, 1.442695
    %v924 = vpow.pop %v923
    %v925 = vadd.f32 %v924, 1.0
    %v926 = vrcp.pop %v925
    %v927 = vmul.f32 %v925, %v926
    %v928 = vsub.f32 1.0, %v927
    %v929 = vmul.f32 %v926, %v928
    %v930 = vadd.f32 %v926, %v929
    %vm931 = vweird.f32 %v925
    %vm932 = vweird.f32 %v926
    %vm933 = vmor %vm931, %vm932
    %v934 = vsel %vm933, %v926, %v930
    %v935 = vand.u32 2147483647, %v925
    %vm936 = vcmp.eq.f32.partialorder %v935, 8.507059e+37
    %v937 = vand.u32 %v925, 2147483648
    %v938 = vor.u32 1.1754944e-38, %v937
    %v939 = vsel %vm936, %v938, %v934
    %v940 = vmul.f32 1.0, %v939
    %v941 = vtanh.pop %v920
    %v942 = vmul.f32 %v940, %v882
    %944 = vrot.lane.b32.xlu0 %v941, 64
    %v945 = vpop.permute.xlu0 %944
    %v947 = vmul.f32 %v940, %v945
    %949 = vrot.lane.b32.xlu0 %v947, 32
    %v950 = vpop.permute.xlu0 %949
    %v952 = vadd.f32 %v942, %v950
    %v953 = vtanh.pop %v952
    %955 = vrot.lane.b32.xlu0 %v953, 64
    %v956 = vpop.permute.xlu0 %955
    %v958 = vmul.f32 %v940, %v956
    %959 = vrot.lane.b32.xlu0 %v458, 32
    %v960 = vpop.permute.xlu0 %959
    %962 = vst.msk [vmem:[#allocation4] sm:$0xf] %vm597, %v960
    %964 = vrot.lane.b32.xlu0 %v958, 64
    %v965 = vpop.permute.xlu0 %964
    %967 = vst.msk [vmem:[#allocation4] sm:$0xf] %vm615, %v965
    %v968 = vld [vmem:[#allocation4] sm:$0xf]
    %v970 = vsel %vm618, %v968, 0
    %972 = vmatpush.msra.mxu0 0.0
    %973 = vmatpush.msra.mxu0 0.0
    %974 = vmatpush.msra.mxu0 0.0
    %975 = vmatpush.msra.mxu0 0.0
    %976 = vmatpush.msra.mxu0 0.0
    %977 = vmatpush.msra.mxu0 0.0
    %978 = vmatpush.msra.mxu0 0.0
    %979 = vmatpush.msra.mxu0 0.0
    %980 = vmatpush.msra.mxu0 %v606
    %981 = vmatpush.msra.mxu0 %v605
    %982 = vmatpush.msra.mxu0 %v604
    %983 = vmatpush.msra.mxu0 %v603
    %984 = vmatpush.msra.mxu0 %v602
    %985 = vmatpush.msra.mxu0 %v601
    %986 = vmatpush.msra.mxu0 %v600
    %987 = vmatpush.msra.mxu0 %v599
    %988 = vmatmul.f32.gmra.mxu0 %v970
    %v989 = vpop.f32.mrf.mxu0
    %v990 = vadd.f32 %v609, %v989
    %991 = vdwg.mxu0
    %v992 = vxor.u32 %v990, 2147483648
    %v993 = vmul.f32 %v992, 1.442695
    %v994 = vpow.pop %v993
    %v995 = vadd.f32 %v994, 1.0
    %v996 = vrcp.pop %v995
    %v997 = vmul.f32 %v995, %v996
    %v998 = vsub.f32 1.0, %v997
    %v999 = vmul.f32 %v996, %v998
    %v1000 = vadd.f32 %v996, %v999
    %vm1001 = vweird.f32 %v995
    %vm1002 = vweird.f32 %v996
    %vm1003 = vmor %vm1001, %vm1002
    %v1004 = vsel %vm1003, %v996, %v1000
    %v1005 = vand.u32 2147483647, %v995
    %vm1006 = vcmp.eq.f32.partialorder %v1005, 8.507059e+37
    %v1007 = vand.u32 %v995, 2147483648
    %v1008 = vor.u32 1.1754944e-38, %v1007
    %v1009 = vsel %vm1006, %v1008, %v1004
    %v1010 = vmul.f32 1.0, %v1009
    %v1011 = vtanh.pop %v990
    %v1012 = vmul.f32 %v1010, %v952
    %1014 = vrot.lane.b32.xlu0 %v1011, 64
    %v1015 = vpop.permute.xlu0 %1014
    %v1017 = vmul.f32 %v1010, %v1015
    %1019 = vrot.lane.b32.xlu0 %v1017, 32
    %v1020 = vpop.permute.xlu0 %1019
    %v1022 = vadd.f32 %v1012, %v1020
    %v1023 = vtanh.pop %v1022
    %1025 = vrot.lane.b32.xlu0 %v1023, 64
    %v1026 = vpop.permute.xlu0 %1025
    %v1028 = vmul.f32 %v1010, %v1026
    %1029 = vrot.lane.b32.xlu0 %v525, 32
    %v1030 = vpop.permute.xlu0 %1029
    %1032 = vst.msk [vmem:[#allocation4] sm:$0xf] %vm597, %v1030
    %1034 = vrot.lane.b32.xlu0 %v1028, 64
    %v1035 = vpop.permute.xlu0 %1034
    %1037 = vst.msk [vmem:[#allocation4] sm:$0xf] %vm615, %v1035
    %v1038 = vld [vmem:[#allocation4] sm:$0xf]
    %v1040 = vsel %vm618, %v1038, 0
    %1042 = vmatpush.msra.mxu0 0.0
    %1043 = vmatpush.msra.mxu0 0.0
    %1044 = vmatpush.msra.mxu0 0.0
    %1045 = vmatpush.msra.mxu0 0.0
    %1046 = vmatpush.msra.mxu0 0.0
    %1047 = vmatpush.msra.mxu0 0.0
    %1048 = vmatpush.msra.mxu0 0.0
    %1049 = vmatpush.msra.mxu0 0.0
    %1050 = vmatpush.msra.mxu0 %v606
    %1051 = vmatpush.msra.mxu0 %v605
    %1052 = vmatpush.msra.mxu0 %v604
    %1053 = vmatpush.msra.mxu0 %v603
    %1054 = vmatpush.msra.mxu0 %v602
    %1055 = vmatpush.msra.mxu0 %v601
    %1056 = vmatpush.msra.mxu0 %v600
    %1057 = vmatpush.msra.mxu0 %v599
    %1058 = vmatmul.f32.gmra.mxu0 %v1040
    %v1059 = vpop.f32.mrf.mxu0
    %v1060 = vadd.f32 %v609, %v1059
    %1061 = vdwg.mxu0
    %v1062 = vxor.u32 %v1060, 2147483648
    %v1063 = vmul.f32 %v1062, 1.442695
    %v1064 = vpow.pop %v1063
    %v1065 = vadd.f32 %v1064, 1.0
    %v1066 = vrcp.pop %v1065
    %v1067 = vmul.f32 %v1065, %v1066
    %v1068 = vsub.f32 1.0, %v1067
    %v1069 = vmul.f32 %v1066, %v1068
    %v1070 = vadd.f32 %v1066, %v1069
    %vm1071 = vweird.f32 %v1065
    %vm1072 = vweird.f32 %v1066
    %vm1073 = vmor %vm1071, %vm1072
    %v1074 = vsel %vm1073, %v1066, %v1070
    %v1075 = vand.u32 2147483647, %v1065
    %vm1076 = vcmp.eq.f32.partialorder %v1075, 8.507059e+37
    %v1077 = vand.u32 %v1065, 2147483648
    %v1078 = vor.u32 1.1754944e-38, %v1077
    %v1079 = vsel %vm1076, %v1078, %v1074
    %v1080 = vmul.f32 1.0, %v1079
    %v1081 = vtanh.pop %v1060
    %v1082 = vmul.f32 %v1080, %v1022
    %1084 = vrot.lane.b32.xlu0 %v1081, 64
    %v1085 = vpop.permute.xlu0 %1084
    %v1087 = vmul.f32 %v1080, %v1085
    %1089 = vrot.lane.b32.xlu0 %v1087, 32
    %v1090 = vpop.permute.xlu0 %1089
    %v1092 = vadd.f32 %v1082, %v1090
    %v1093 = vtanh.pop %v1092
    %1095 = vrot.lane.b32.xlu0 %v1093, 64
    %v1096 = vpop.permute.xlu0 %1095
    %v1098 = vmul.f32 %v1080, %v1096
    %1099 = vst.msk [vmem:[#allocation4] sm:$0xf] %vm597, %v595
    %1101 = vrot.lane.b32.xlu0 %v1098, 64
    %v1102 = vpop.permute.xlu0 %1101
    %1104 = vst.msk [vmem:[#allocation4] sm:$0xf] %vm615, %v1102
    %v1105 = vld [vmem:[#allocation4] sm:$0xf]
    %v1107 = vsel %vm618, %v1105, 0
    %1109 = vmatpush.msra.mxu0 0.0
    %1110 = vmatpush.msra.mxu0 0.0
    %1111 = vmatpush.msra.mxu0 0.0
    %1112 = vmatpush.msra.mxu0 0.0
    %1113 = vmatpush.msra.mxu0 0.0
    %1114 = vmatpush.msra.mxu0 0.0
    %1115 = vmatpush.msra.mxu0 0.0
    %1116 = vmatpush.msra.mxu0 0.0
    %1117 = vmatpush.msra.mxu0 %v606
    %1118 = vmatpush.msra.mxu0 %v605
    %1119 = vmatpush.msra.mxu0 %v604
    %1120 = vmatpush.msra.mxu0 %v603
    %1121 = vmatpush.msra.mxu0 %v602
    %1122 = vmatpush.msra.mxu0 %v601
    %1123 = vmatpush.msra.mxu0 %v600
    %1124 = vmatpush.msra.mxu0 %v599
    %1125 = vmatmul.f32.gmra.mxu0 %v1107
    %v1126 = vpop.f32.mrf.mxu0
    %v1127 = vadd.f32 %v609, %v1126
    %1128 = vdwg.mxu0
    %v1129 = vxor.u32 %v1127, 2147483648
    %v1130 = vmul.f32 %v1129, 1.442695
    %v1131 = vpow.pop %v1130
    %v1132 = vadd.f32 %v1131, 1.0
    %v1133 = vrcp.pop %v1132
    %v1134 = vmul.f32 %v1132, %v1133
    %v1135 = vsub.f32 1.0, %v1134
    %v1136 = vmul.f32 %v1133, %v1135
    %v1137 = vadd.f32 %v1133, %v1136
    %vm1138 = vweird.f32 %v1132
    %vm1139 = vweird.f32 %v1133
    %vm1140 = vmor %vm1138, %vm1139
    %v1141 = vsel %vm1140, %v1133, %v1137
    %v1142 = vand.u32 2147483647, %v1132
    %vm1143 = vcmp.eq.f32.partialorder %v1142, 8.507059e+37
    %v1144 = vand.u32 %v1132, 2147483648
    %v1145 = vor.u32 1.1754944e-38, %v1144
    %v1146 = vsel %vm1143, %v1145, %v1141
    %v1147 = vmul.f32 1.0, %v1146
    %v1148 = vtanh.pop %v1127
    %v1149 = vmul.f32 %v1147, %v1092
    %1151 = vrot.lane.b32.xlu0 %v1148, 64
    %v1152 = vpop.permute.xlu0 %1151
    %v1154 = vmul.f32 %v1147, %v1152
    %1156 = vrot.lane.b32.xlu0 %v1154, 32
    %v1157 = vpop.permute.xlu0 %1156
    %v1159 = vadd.f32 %v1149, %v1157
    %v1160 = vtanh.pop %v1159
    %1162 = vrot.lane.b32.xlu0 %v1160, 64
    %v1163 = vpop.permute.xlu0 %1162
    %v1165 = vmul.f32 %v1147, %v1163
    %1167 = vrot.lane.b32.xlu0 %v1165, 32
    %v1168 = vpop.permute.xlu0 %1167
    %1170 = vst.msk [vmem:[#allocation2 + $0x4] sm:$0xf] %vm597, %v1168
    %v1171 = vld [vmem:[#allocation2] sm:$0xff]
    %v1172 = vmax.f32 %v1171, 0.0
    %v1173 = vld [vmem:[%s5] sm:$0xff]
    %v1174 = vld [vmem:[%s5 + $0x8] sm:$0xff]
    %v1175 = vld [vmem:[%s5 + $0x10] sm:$0xff]
    %v1176 = vld [vmem:[%s5 + $0x18] sm:$0xff]
    %v1177 = vld [vmem:[%s6] sm:$0x1]
    %v1179 = vperm.slane %v1177, 0
    %vm1181 = vcmask 261120
    %v1183 = vsel %vm1181, %v1172, 0
    %1185 = vmatpush.msra.mxu0 0.0
    %1186 = vmatpush.msra.mxu0 0.0
    %1187 = vmatpush.msra.mxu0 0.0
    %1188 = vmatpush.msra.mxu0 0.0
    %1189 = vmatpush.msra.mxu0 0.0
    %1190 = vmatpush.msra.mxu0 0.0
    %1191 = vmatpush.msra.mxu0 0.0
    %1192 = vmatpush.msra.mxu0 0.0
    %1193 = vmatpush.msra.mxu0 0.0
    %1194 = vmatpush.msra.mxu0 0.0
    %1195 = vmatpush.msra.mxu0 0.0
    %1196 = vmatpush.msra.mxu0 0.0
    %1197 = vmatpush.msra.mxu0 %v1176
    %1198 = vmatpush.msra.mxu0 %v1175
    %1199 = vmatpush.msra.mxu0 %v1174
    %1200 = vmatpush.msra.mxu0 %v1173
    %1201 = vmatmul.f32.gmra.mxu0 %v1183
    %v1202 = vpop.f32.mrf.mxu0
    %v1203 = vadd.f32 %v1179, %v1202
    %1204 = vdwg.mxu0
    %v1205 = vmax.f32 %v1203, 0.0
    %v1206 = vld [vmem:[%s7] sm:$0xff]
    %v1207 = vld [vmem:[%s7 + $0x8] sm:$0xff]
    %v1208 = vld [vmem:[%s7 + $0x10] sm:$0xff]
    %v1209 = vld [vmem:[%s7 + $0x18] sm:$0xff]
    %v1210 = vld [vmem:[%s7 + $0x20] sm:$0xff]
    %v1211 = vld [vmem:[%s7 + $0x28] sm:$0xff]
    %v1212 = vld [vmem:[%s7 + $0x30] sm:$0xff]
    %v1213 = vld [vmem:[%s7 + $0x38] sm:$0xff]
    %v1214 = vld [vmem:[%s7 + $0x40] sm:$0xff]
    %v1215 = vld [vmem:[%s7 + $0x48] sm:$0xff]
    %v1216 = vld [vmem:[%s7 + $0x50] sm:$0xff]
    %v1217 = vld [vmem:[%s7 + $0x58] sm:$0xff]
    %v1218 = vld [vmem:[%s7 + $0x60] sm:$0xff]
    %v1219 = vld [vmem:[%s7 + $0x68] sm:$0xff]
    %v1220 = vld [vmem:[%s7 + $0x70] sm:$0xff]
    %v1221 = vld [vmem:[%s7 + $0x78] sm:$0xff]
    %v1222 = vld [vmem:[%s8] sm:$0x1]
    %v1224 = vperm.slane %v1222, 0
    %1226 = vmatpush.msra.mxu0 %v1221
    %1227 = vmatpush.msra.mxu0 %v1220
    %1228 = vmatpush.msra.mxu0 %v1219
    %1229 = vmatpush.msra.mxu0 %v1218
    %1230 = vmatpush.msra.mxu0 %v1217
    %1231 = vmatpush.msra.mxu0 %v1216
    %1232 = vmatpush.msra.mxu0 %v1215
    %1233 = vmatpush.msra.mxu0 %v1214
    %1234 = vmatpush.msra.mxu0 %v1213
    %1235 = vmatpush.msra.mxu0 %v1212
    %1236 = vmatpush.msra.mxu0 %v1211
    %1237 = vmatpush.msra.mxu0 %v1210
    %1238 = vmatpush.msra.mxu0 %v1209
    %1239 = vmatpush.msra.mxu0 %v1208
    %1240 = vmatpush.msra.mxu0 %v1207
    %1241 = vmatpush.msra.mxu0 %v1206
    %1242 = vmatmul.f32.gmra.mxu0 %v1205
    %v1243 = vpop.f32.mrf.mxu0
    %v1244 = vadd.f32 %v1224, %v1243
    %1245 = vdwg.mxu0
    %vm1246 = vcmask 64512
    %1247 = vst.msk [vmem:[#allocation5] sm:$0xff] %vm1246, %v1244
    // Predicated region
    $region38: #{lstm_classification_forward.1} parent=1 // pred_check
      _
    $region39: #{lstm_classification_forward.1} parent=1 // pred_check_branch
      %1249 = sbr.rel (0) target = $region41
    $region40: #{lstm_classification_forward.1} parent=1 // pred_region
      %1251 = vsyncadd [#allocation6], 0
      %s1253 = sshll.u32 [#allocation5], 4
      %s1254 = int_to_ptr.vmem [resolvable:$true] %s1253
      %s1255 = sshll.u32 %s9, 4
      %s1256 = int_to_ptr.hbm [resolvable:$true] %s1255
      %1258 = dma.vmem_to_hbm [thread:$0]  %s1254, 128, %s1256, [#allocation6]
    $region41: #{lstm_classification_forward.1} parent=1 // pred_fallthru
      _
    // Predicated region
    $region42: #{lstm_classification_forward.1} parent=1 // pred_check
      _
    $region43: #{lstm_classification_forward.1} parent=1 // pred_check_branch
      %1260 = sbr.rel (0) target = $region45
    $region44: #{lstm_classification_forward.1} parent=1 // pred_region
      %1262 = dma.done [#allocation6], 128
    $region45: #{lstm_classification_forward.1} parent=1 // pred_fallthru
      _
    %1263 = vsyncpa [#allocation6], 1

</llo_original>
